<compile_context>
chip_gen: v5e
topology: v5e:2x2
jax: 0.10.0
libtpu: 0.0.40
codegen_flags: <defaults>
</compile_context>

<pallas_src>
import functools

import jax
import jax.numpy as jnp
from jax.experimental import pallas as pl
from jax.experimental.pallas import tpu as pltpu


# ----------------------------------------------------------------------------
# helpers
# ----------------------------------------------------------------------------
def _pick_tile(dim, desired, align):
    """Largest tile <= desired that divides `dim` and is a multiple of `align`.
    Falls back to the full dimension, which is always a legal block."""
    if dim <= desired:
        return dim
    t = (desired // align) * align
    while t >= align:
        if dim % t == 0:
            return t
        t -= align
    return dim


def _lane_tile(dim, desired):
    """Lane (last-dim) tile: prefer multiples of 256 (2x256^2 MXU on v6e/v7x),
    fall back to multiples of 128, else the full dimension."""
    if dim <= desired:
        return dim
    if dim % 256 == 0:
        t = _pick_tile(dim, desired, 256)
        if t <= desired:
            return t
    return _pick_tile(dim, desired, 128)


def _pad128(n):
    return -(-n // 128) * 128


def _compiler_params(semantics, working_set_bytes):
    # 2x headroom over the double-buffered working set, clamped to 48 MiB so it
    # also leaves room for compiler scratch inside v7x's 64 MiB per-TC VMEM.
    limit = int(min(max(2 * working_set_bytes, 32 * 1024 * 1024),
                    48 * 1024 * 1024))
    return pltpu.CompilerParams(dimension_semantics=semantics,
                                vmem_limit_bytes=limit)


# ----------------------------------------------------------------------------
# Tiled linear: out = x @ w (+ b)
# ----------------------------------------------------------------------------
def _matmul_kernel(x_ref, w_ref, o_ref, acc_ref):
    @pl.when(pl.program_id(2) == 0)
    def _():
        acc_ref[...] = jnp.zeros_like(acc_ref)

    acc_ref[...] += jnp.dot(x_ref[...], w_ref[...],
                            preferred_element_type=jnp.float32)

    @pl.when(pl.program_id(2) == pl.num_programs(2) - 1)
    def _():
        o_ref[...] = acc_ref[...].astype(o_ref.dtype)


def _matmul_bias_kernel(x_ref, w_ref, b_ref, o_ref, acc_ref):
    @pl.when(pl.program_id(2) == 0)
    def _():
        acc_ref[...] = jnp.zeros_like(acc_ref)

    acc_ref[...] += jnp.dot(x_ref[...], w_ref[...],
                            preferred_element_type=jnp.float32)

    @pl.when(pl.program_id(2) == pl.num_programs(2) - 1)
    def _():
        o_ref[...] = (acc_ref[...]
                      + b_ref[...].astype(jnp.float32)).astype(o_ref.dtype)


def linear(x2d, w, b=None, *, out_dtype=None, tm=512, tn=512, tk=512):
    """x2d: (M, K); w: (K, N); b: (N,) or None.  Returns (M, N) in out_dtype."""
    M, K = x2d.shape
    Kw, N = w.shape
    assert K == Kw
    out_dtype = out_dtype or x2d.dtype

    sub = 16 if x2d.dtype == jnp.bfloat16 else 8     # bf16 packs 2 sublanes
    tm = _pick_tile(M, tm, sub)
    tn = _lane_tile(N, tn)
    tk = _lane_tile(K, tk)
    grid = (M // tm, N // tn, K // tk)

    x_bytes = jnp.dtype(x2d.dtype).itemsize
    w_bytes = jnp.dtype(w.dtype).itemsize
    o_bytes = jnp.dtype(out_dtype).itemsize
    working = (2 * (tm * tk * x_bytes + tk * tn * w_bytes)
               + 2 * tm * tn * o_bytes + tm * tn * 4)

    x_spec = pl.BlockSpec((tm, tk), lambda i, j, k: (i, k))
    w_spec = pl.BlockSpec((tk, tn), lambda i, j, k: (k, j))
    o_spec = pl.BlockSpec((tm, tn), lambda i, j, k: (i, j))

    cost = pl.CostEstimate(
        flops=2 * M * K * N,
        transcendentals=0,
        bytes_accessed=M * K * x_bytes + K * N * w_bytes + M * N * o_bytes)

    common = dict(
        out_shape=jax.ShapeDtypeStruct((M, N), out_dtype),
        grid=grid,
        out_specs=o_spec,
        scratch_shapes=[pltpu.VMEM((tm, tn), jnp.float32)],
        compiler_params=_compiler_params(
            ("parallel", "parallel", "arbitrary"), working),
        cost_estimate=cost,
    )

    if b is None:   # qkv_bias=False path: no pointless zero-bias DMA / add
        return pl.pallas_call(_matmul_kernel,
                              in_specs=[x_spec, w_spec], **common)(x2d, w)

    b_spec = pl.BlockSpec((1, tn), lambda i, j, k: (0, j))
    return pl.pallas_call(_matmul_bias_kernel,
                          in_specs=[x_spec, w_spec, b_spec],
                          **common)(x2d, w, b.reshape(1, N))


# ----------------------------------------------------------------------------
# Flash-style attention: softmax(q k^T * scale + bias) @ v with online softmax,
# all heads batched per grid step, mask -> bias built in-kernel, per-tile mask
# summary used to skip fully-masked tiles / skip bias on all-valid tiles,
# lane-dense (B, N, C) output written in-kernel.
# ----------------------------------------------------------------------------
def _attn_init(m_sc, l_sc, acc_sc):
    m_sc[...] = jnp.full_like(m_sc, -jnp.inf)
    l_sc[...] = jnp.zeros_like(l_sc)
    acc_sc[...] = jnp.zeros_like(acc_sc)


def _scores(q_ref, kt_ref, scale):
    # scale folded into q: H*tq*d muls instead of H*tq*tk.
    q = q_ref[0] * scale                               # (H, tq, d)
    return jnp.einsum('hqd,hdk->hqk', q, kt_ref[0],    # K already (H, d, tk)
                      preferred_element_type=jnp.float32)


def _attn_update(s, v, m_sc, l_sc, acc_sc):
    """Online-softmax update for one KV tile.  s: (H, tq, tk) f32."""
    m_prev = m_sc[...]
    m_new = jnp.maximum(m_prev, jnp.max(s, axis=-1, keepdims=True))
    alpha = jnp.exp(m_prev - m_new)
    p = jnp.exp(s - m_new)
    l_sc[...] = alpha * l_sc[...] + jnp.sum(p, axis=-1, keepdims=True)
    acc_sc[...] = alpha * acc_sc[...] + jnp.einsum(
        'hqk,hkd->hqd', p.astype(v.dtype), v,
        preferred_element_type=jnp.float32)
    m_sc[...] = m_new


def _attn_finalize(o_ref, l_sc, acc_sc):
    H, _, d = acc_sc.shape
    l = l_sc[...]
    # Rows with zero accumulated mass (all tiles skipped) produce 0, not NaN.
    # approx=True keeps the divide on the EUP; use approx=False for bit-tight
    # parity if ever needed.
    inv = pl.reciprocal(jnp.where(l == 0.0, 1.0, l), approx=True)
    out = acc_sc[...] * inv                            # (H, tq, d) f32
    for h in range(H):                                 # lane-dense (tq, H*d)
        o_ref[0, :, h * d:(h + 1) * d] = out[h].astype(o_ref.dtype)


def _flash_attn_mask_kernel(summ_ref, q_ref, kt_ref, v_ref, mask_ref, o_ref,
                            m_sc, l_sc, acc_sc, *, scale):
    b = pl.program_id(0)
    qi = pl.program_id(1)
    ki = pl.program_id(2)

    @pl.when(ki == 0)
    def _():
        _attn_init(m_sc, l_sc, acc_sc)

    # per-tile mask summary: 0 = fully masked, 1 = all valid, 2 = mixed
    summ = summ_ref[(b * pl.num_programs(1) + qi) * pl.num_programs(2) + ki]

    @pl.when(summ == 1)                      # all-valid tile: no bias math
    def _():
        s = _scores(q_ref, kt_ref, scale)
        _attn_update(s, v_ref[0], m_sc, l_sc, acc_sc)

    @pl.when(summ == 2)                      # mixed tile: build bias in-kernel
    def _():
        s = _scores(q_ref, kt_ref, scale)
        m = mask_ref[0].astype(jnp.float32)  # (tq, tk), shared over heads
        bias = jnp.where(m == 0.0, -100000000.0,
                         jnp.where(m == 1.0, 0.0, m))
        _attn_update(s + bias[None, :, :], v_ref[0], m_sc, l_sc, acc_sc)

    # summ == 0: fully masked KV tile -> all compute skipped (exact: those
    # keys contribute exp(-1e8 - m) == 0 in f32).

    @pl.when(ki == pl.num_programs(2) - 1)
    def _():
        _attn_finalize(o_ref, l_sc, acc_sc)


def _flash_attn_nomask_kernel(q_ref, kt_ref, v_ref, o_ref,
                              m_sc, l_sc, acc_sc, *, scale):
    ki = pl.program_id(2)

    @pl.when(ki == 0)
    def _():
        _attn_init(m_sc, l_sc, acc_sc)

    s = _scores(q_ref, kt_ref, scale)
    _attn_update(s, v_ref[0], m_sc, l_sc, acc_sc)

    @pl.when(ki == pl.num_programs(2) - 1)
    def _():
        _attn_finalize(o_ref, l_sc, acc_sc)


def flash_attention(q, kt, v, mask, scale, *, tq=128, tk=256):
    """q: (B,H,N,d); kt: (B,H,d,N); v: (B,H,N,d); mask: (B,N,N) 0/1 (or None).
    Returns lane-dense (B, N, H*d) in q.dtype."""
    B, H, N, d = q.shape
    C = H * d

    sub = 16 if q.dtype == jnp.bfloat16 else 8
    tq = _pick_tile(N, tq, sub)
    tk = _lane_tile(N, tk)
    nq, nk = N // tq, N // tk
    grid = (B, nq, nk)

    e = jnp.dtype(q.dtype).itemsize
    working = (2 * H * tq * _pad128(d) * e          # q tiles (double-buffered)
               + 2 * H * d * tk * e                 # k^T tiles
               + 2 * H * tk * _pad128(d) * e        # v tiles
               + 2 * tq * _pad128(C) * e            # lane-dense output tile
               + 2 * H * tq * 128 * 4               # m/l scratch (lane-padded)
               + H * tq * _pad128(d) * 4            # acc scratch
               + 3 * H * tq * tk * 4)               # s/p f32 temporaries
    if mask is not None:
        working += 2 * tq * tk * jnp.dtype(mask.dtype).itemsize

    out_shape = jax.ShapeDtypeStruct((B, N, C), q.dtype)
    scratch = [pltpu.VMEM((H, tq, 1), jnp.float32),   # running max
               pltpu.VMEM((H, tq, 1), jnp.float32),   # running denom
               pltpu.VMEM((H, tq, d), jnp.float32)]   # output accumulator
    cost = pl.CostEstimate(
        flops=4 * B * H * N * N * d,
        transcendentals=B * H * N * N,
        bytes_accessed=(4 * B * N * C * e
                        + (B * N * N * jnp.dtype(mask.dtype).itemsize
                           if mask is not None else 0)))
    cparams = _compiler_params(("parallel", "parallel", "arbitrary"), working)

    if mask is None:
        q_spec = pl.BlockSpec((1, H, tq, d), lambda b, qi, ki: (b, 0, qi, 0))
        kt_spec = pl.BlockSpec((1, H, d, tk), lambda b, qi, ki: (b, 0, 0, ki))
        v_spec = pl.BlockSpec((1, H, tk, d), lambda b, qi, ki: (b, 0, ki, 0))
        o_spec = pl.BlockSpec((1, tq, C), lambda b, qi, ki: (b, qi, 0))
        return pl.pallas_call(
            functools.partial(_flash_attn_nomask_kernel, scale=scale),
            out_shape=out_shape,
            grid=grid,
            in_specs=[q_spec, kt_spec, v_spec],
            out_specs=o_spec,
            scratch_shapes=scratch,
            compiler_params=cparams,
            cost_estimate=cost,
        )(q, kt, v)

    # Per-tile mask summary (cheap XLA reduce in the wrapper, prefetched to
    # SMEM): 0 = fully masked (skip tile), 1 = all valid (skip bias), 2 = mixed.
    mt = mask.reshape(B, nq, tq, nk, tk)
    all_zero = jnp.all(mt == 0, axis=(2, 4))
    all_one = jnp.all(mt == 1, axis=(2, 4))
    summary = jnp.where(all_zero, 0,
                        jnp.where(all_one, 1, 2)).astype(jnp.int32).reshape(-1)

    q_spec = pl.BlockSpec((1, H, tq, d), lambda b, qi, ki, s: (b, 0, qi, 0))
    kt_spec = pl.BlockSpec((1, H, d, tk), lambda b, qi, ki, s: (b, 0, 0, ki))
    v_spec = pl.BlockSpec((1, H, tk, d), lambda b, qi, ki, s: (b, 0, ki, 0))
    m_spec = pl.BlockSpec((1, tq, tk), lambda b, qi, ki, s: (b, qi, ki))
    o_spec = pl.BlockSpec((1, tq, C), lambda b, qi, ki, s: (b, qi, 0))

    grid_spec = pltpu.PrefetchScalarGridSpec(
        num_scalar_prefetch=1,
        grid=grid,
        in_specs=[q_spec, kt_spec, v_spec, m_spec],
        out_specs=o_spec,
        scratch_shapes=scratch)

    return pl.pallas_call(
        functools.partial(_flash_attn_mask_kernel, scale=scale),
        out_shape=out_shape,
        grid_spec=grid_spec,
        compiler_params=cparams,
        cost_estimate=cost,
    )(summary, q, kt, v, mask)


# ----------------------------------------------------------------------------
# Full forward (glue in plain JAX, hot paths in Pallas)
# ----------------------------------------------------------------------------
def attention_forward(x, attn_mask, params, num_heads,
                      *, compute_dtype=jnp.float32, tq=128, tk=256):
    B, N, C = x.shape
    H = num_heads
    d = C // H
    scale = d ** (-0.5)

    x2d = x.reshape(B * N, C).astype(compute_dtype)

    # qkv projection; qkv_bias=False -> bias-free matmul path.
    w_qkv = params["w_qkv"].T.astype(compute_dtype)             # (C, 3C)
    qkv = linear(x2d, w_qkv, None, out_dtype=compute_dtype)     # (B*N, 3C)

    # Head split (one XLA relayout).  K is produced directly in (B, H, d, N)
    # so the in-kernel QK^T is a canonical batched matmul (no per-tile K
    # transpose on the XLU).
    # TODO(synk): reading q/k/v straight from the (B*N, 3C) buffer inside the
    # attention kernel (head split via BlockSpec) would remove this relayout.
    qkv5 = qkv.reshape(B, N, 3, H, d)
    q = qkv5[:, :, 0].transpose(0, 2, 1, 3)                     # (B, H, N, d)
    kt = qkv5[:, :, 1].transpose(0, 2, 3, 1)                    # (B, H, d, N)
    v = qkv5[:, :, 2].transpose(0, 2, 1, 3)                     # (B, H, N, d)

    # Raw mask (B, N, N) in its original dtype; bias is built in-kernel.
    mask = None if attn_mask is None else attn_mask[:, 0]

    # Lane-dense (B, N, C) output -> feeds the projection with no transpose.
    o = flash_attention(q, kt, v, mask, scale, tq=tq, tk=tk)
    o2d = o.reshape(B * N, C)

    w_proj = params["w_proj"].T.astype(compute_dtype)
    y = linear(o2d, w_proj, params["b_proj"], out_dtype=x.dtype)
    return y.reshape(B, N, C)                                   # proj_drop = id

# TODO(synk): attention_pe_mode='2d_rope' (VisionRotaryEmbeddingFast) and the
# xformers/flash/rebased/ring modes of the PyTorch module are not implemented;
# this kernel covers the configured 'math' path with pe_mode=None.


# Pure-JAX reference for a sanity check (mirrors the PyTorch 'math' branch).
def reference_forward(x, attn_mask, params, num_heads):
    B, N, C = x.shape
    d = C // num_heads
    qkv = x @ params["w_qkv"].T
    qkv = qkv.reshape(B, N, 3, num_heads, d).transpose(2, 0, 3, 1, 4)
    q, k, v = qkv[0], qkv[1], qkv[2]
    attn = (q @ jnp.swapaxes(k, -2, -1)) * (d ** -0.5)
    if attn_mask is not None:
        mask = attn_mask                                  # (B, 1, N, N)
        bias = jnp.where(mask == 0, -100000000.0, mask)
        bias = jnp.where(mask == 1, 0.0, bias)
        attn = attn + bias
    attn = jax.nn.softmax(attn, axis=-1)
    o = (attn @ v).transpose(0, 2, 1, 3).reshape(B, N, C)
    return o @ params["w_proj"].T + params["b_proj"]


if __name__ == "__main__":
    # Small but multi-tile (tq=tk=128 -> 2x2 KV grid) so the fully-masked-skip,
    # all-valid-skip and mixed-tile paths of the mask kernel all execute.
    B, N, C, H = 2, 256, 64, 8

    key = jax.random.PRNGKey(0)
    k0, k1, k2, k3 = jax.random.split(key, 4)

    # Deterministic synthetic parameters (PyTorch-style (out, in) weights).
    params = {
        "w_qkv": 0.02 * jax.random.normal(k0, (3 * C, C), jnp.float32),
        "b_qkv": jnp.zeros((3 * C,), jnp.float32),   # qkv_bias=False (unused)
        "w_proj": 0.02 * jax.random.normal(k1, (C, C), jnp.float32),
        "b_proj": 0.01 * jax.random.normal(k2, (C,), jnp.float32),
    }

    x = jax.random.normal(k3, (B, N, C), jnp.float32)
    # 0/1 attention mask, shape (B, 1, N, N): lower-triangular (causal-like).
    attn_mask = jnp.broadcast_to(
        jnp.tril(jnp.ones((N, N), jnp.float32))[None, None], (B, 1, N, N))

    # f32 masked path (tight check).
    ref = reference_forward(x, attn_mask, params, H)
    out = attention_forward(x, attn_mask, params, H, tq=128, tk=128)
    out = jax.block_until_ready(out)
    assert out.shape == (B, N, C)
    assert jnp.allclose(out, ref, atol=1e-3, rtol=1e-3), "f32 masked mismatch"

    # attn_mask=None path (separate bias-free kernel).
    ref_nm = reference_forward(x, None, params, H)
    out_nm = attention_forward(x, None, params, H, tq=128, tk=128)
    out_nm = jax.block_until_ready(out_nm)
    assert jnp.allclose(out_nm, ref_nm, atol=1e-3, rtol=1e-3), \
        "f32 no-mask mismatch"

    # bf16 MXU-input path (softmax / accumulation stay f32).
    out_bf16 = attention_forward(x, attn_mask, params, H,
                                 compute_dtype=jnp.bfloat16, tq=128, tk=128)
    out_bf16 = jax.block_until_ready(out_bf16)
    assert jnp.allclose(out_bf16.astype(jnp.float32), ref,
                        atol=5e-2, rtol=5e-2), "bf16 mismatch vs reference"

    print("KERNEL_OK")
</pallas_src>

<mosaic_0001>
module attributes {stable_mosaic.version = 11 : i64} {
  func.func @_matmul_kernel(%arg0: i32, %arg1: i32, %arg2: i32, %arg3: memref<512x64xf32, #tpu.memory_space<vmem>>, %arg4: memref<64x192xf32, #tpu.memory_space<vmem>>, %arg5: memref<512x192xf32, #tpu.memory_space<vmem>>, %arg6: memref<512x192xf32, #tpu.memory_space<vmem>>) attributes {dimension_semantics = [#tpu.dimension_semantics<parallel>, #tpu.dimension_semantics<parallel>, #tpu.dimension_semantics<arbitrary>], iteration_bounds = array<i64: 1, 1, 1>, scalar_prefetch = 0 : i64, scratch_operands = 1 : i64, tpu.core_type = #tpu.core_type<tc>, window_params = [{transform_indices = @transform_0, window_bounds = array<i64: 512, 64>}, {transform_indices = @transform_1, window_bounds = array<i64: 64, 192>}, {transform_indices = @transform_2, window_bounds = array<i64: 512, 192>}]} {
    %c0_i32 = arith.constant 0 : i32
    %0 = arith.cmpi eq, %arg2, %c0_i32 : i32
    %1 = arith.extui %0 : i1 to i32
    %c0_i32_0 = arith.constant 0 : i32
    %2 = arith.cmpi ne, %1, %c0_i32_0 : i32
    scf.if %2 {
      %cst_10 = arith.constant 0.000000e+00 : f32
      %12 = vector.broadcast %cst_10 : f32 to vector<512x192xf32>
      %c0_11 = arith.constant 0 : index
      %c0_12 = arith.constant 0 : index
      %13 = vector.load %arg6[%c0_11, %c0_12] : memref<512x192xf32, #tpu.memory_space<vmem>>, vector<512x192xf32>
      tpu.vector_store %arg6[%c0_11, %c0_12], %12 {strides = array<i32>} : memref<512x192xf32, #tpu.memory_space<vmem>>, vector<512x192xf32>,
    } else {
    }
    %c0 = arith.constant 0 : index
    %c0_1 = arith.constant 0 : index
    %3 = vector.load %arg6[%c0, %c0_1] : memref<512x192xf32, #tpu.memory_space<vmem>>, vector<512x192xf32>
    %c0_2 = arith.constant 0 : index
    %c0_3 = arith.constant 0 : index
    %4 = vector.load %arg3[%c0_2, %c0_3] : memref<512x64xf32, #tpu.memory_space<vmem>>, vector<512x64xf32>
    %c0_4 = arith.constant 0 : index
    %c0_5 = arith.constant 0 : index
    %5 = vector.load %arg4[%c0_4, %c0_5] : memref<64x192xf32, #tpu.memory_space<vmem>>, vector<64x192xf32>
    %cst = arith.constant dense<0.000000e+00> : vector<512x192xf32>
    %6 = tpu.matmul %4, %5, %cst {dimension_numbers = #tpu.dot_dimension_numbers<[1], [0], [0], [1], [0, 0, 1, 1], [], []>} : vector<512x64xf32>, vector<64x192xf32>, vector<512x192xf32> -> vector<512x192xf32>
    %7 = arith.addf %3, %6 : vector<512x192xf32>
    %c0_6 = arith.constant 0 : index
    %c0_7 = arith.constant 0 : index
    %8 = vector.load %arg6[%c0_6, %c0_7] : memref<512x192xf32, #tpu.memory_space<vmem>>, vector<512x192xf32>
    tpu.vector_store %arg6[%c0_6, %c0_7], %7 {strides = array<i32>} : memref<512x192xf32, #tpu.memory_space<vmem>>, vector<512x192xf32>,
    %c0_i32_8 = arith.constant 0 : i32
    %9 = arith.cmpi eq, %arg2, %c0_i32_8 : i32
    %10 = arith.extui %9 : i1 to i32
    %c0_i32_9 = arith.constant 0 : i32
    %11 = arith.cmpi ne, %10, %c0_i32_9 : i32
    scf.if %11 {
      %c0_10 = arith.constant 0 : index
      %c0_11 = arith.constant 0 : index
      %12 = vector.load %arg6[%c0_10, %c0_11] : memref<512x192xf32, #tpu.memory_space<vmem>>, vector<512x192xf32>
      %c0_12 = arith.constant 0 : index
      %c0_13 = arith.constant 0 : index
      %13 = vector.load %arg5[%c0_12, %c0_13] : memref<512x192xf32, #tpu.memory_space<vmem>>, vector<512x192xf32>
      tpu.vector_store %arg5[%c0_12, %c0_13], %12 {strides = array<i32>} : memref<512x192xf32, #tpu.memory_space<vmem>>, vector<512x192xf32>,
    } else {
    }
    return
  }
  func.func @transform_0(%arg0: i32, %arg1: i32, %arg2: i32) -> (i32, i32) {
    %c0_i32 = arith.constant 0 : i32
    return %arg0, %arg2 : i32, i32
  }
  func.func @transform_1(%arg0: i32, %arg1: i32, %arg2: i32) -> (i32, i32) {
    %c0_i32 = arith.constant 0 : i32
    return %arg2, %arg1 : i32, i32
  }
  func.func @transform_2(%arg0: i32, %arg1: i32, %arg2: i32) -> (i32, i32) {
    %c0_i32 = arith.constant 0 : i32
    return %arg0, %arg1 : i32, i32
  }
}

</mosaic_0001>

<llo_original>
// kernel: tpu_custom_call.1
$region0: #{tpu_custom_call.1}
  #allocation0 [shape = 'u32[]', space=smem, size = 0x4, offset = 0x4, fixed_abs, tag = 'smem constant byte address 0x4 - core index']
  #allocation1 [shape = 'u32[72,128]{1,0:T(1,128)}', space=vmem, size = 0x9000, scoped, tag = 'internal scratch']
  #allocation2 [shape = 'f32[512,192]{1,0:T(8,128)}', space=vmem, size = 0x80000, scoped, tag = 'scratch operand']
  %s0 = inlined_call_operand.vmem [shape: f32[512,64], index: 0, kind: input, shape index: {}]
  %s1 = inlined_call_operand.vmem [shape: f32[64,192], index: 1, kind: input, shape index: {}]
  %s2 = inlined_call_operand.vmem [shape: f32[512,192], index: 2, kind: output, shape index: {}]
  %s3 = sld [smem:[#allocation0]]
  $region26: #{tpu_custom_call.1} parent=0
    _
  %s5 = ssub.s32 1, %s3
  %s6 = scalar_select 0, %s5, %s3
  // Predicated region
  $region2: #{tpu_custom_call.1} parent=0 // pred_check
    _
  $region3: #{tpu_custom_call.1} parent=0 // pred_check_branch
    %8 = sbr.rel (0) target = $region5
  $region4: #{tpu_custom_call.1} parent=0 // pred_region
    _
  $region5: #{tpu_custom_call.1} parent=0 // pred_fallthru
    _
  // Predicated region
  $region6: #{tpu_custom_call.1} parent=0 // pred_check
    _
  $region7: #{tpu_custom_call.1} parent=0 // pred_check_branch
    %10 = sbr.rel (0) target = $region9
  $region8: #{tpu_custom_call.1} parent=0 // pred_region
    _
  $region9: #{tpu_custom_call.1} parent=0 // pred_fallthru
    _
  %p11 = scmp.eq.s32.totalorder 0, 0
  // Predicated region
  $region10: #{tpu_custom_call.1} parent=0 // pred_check
    %p12 = pneg %p11
  $region11: #{tpu_custom_call.1} parent=0 // pred_check_branch
    %14 = sbr.rel (%p12) target = $region13
  $region12: #{tpu_custom_call.1} parent=0 // pred_region
    %15 = vst [vmem:[#allocation2] sm:$0xff] 0.0
    %vm16 = vcmask 523264
    %17 = vst.msk [vmem:[#allocation2 + $0x8] sm:$0xff] %vm16, 0.0
    %18 = vst [vmem:[#allocation2 + $0x10] sm:$0xff] 0.0
    %19 = vst.msk [vmem:[#allocation2 + $0x18] sm:$0xff] %vm16, 0.0
    %20 = vst [vmem:[#allocation2 + $0x20] sm:$0xff] 0.0
    %21 = vst.msk [vmem:[#allocation2 + $0x28] sm:$0xff] %vm16, 0.0
    %22 = vst [vmem:[#allocation2 + $0x30] sm:$0xff] 0.0
    %23 = vst.msk [vmem:[#allocation2 + $0x38] sm:$0xff] %vm16, 0.0
    %24 = vst [vmem:[#allocation2 + $0x40] sm:$0xff] 0.0
    %25 = vst.msk [vmem:[#allocation2 + $0x48] sm:$0xff] %vm16, 0.0
    %26 = vst [vmem:[#allocation2 + $0x50] sm:$0xff] 0.0
    %27 = vst.msk [vmem:[#allocation2 + $0x58] sm:$0xff] %vm16, 0.0
    %28 = vst [vmem:[#allocation2 + $0x60] sm:$0xff] 0.0
    %29 = vst.msk [vmem:[#allocation2 + $0x68] sm:$0xff] %vm16, 0.0
    %30 = vst [vmem:[#allocation2 + $0x70] sm:$0xff] 0.0
    %31 = vst.msk [vmem:[#allocation2 + $0x78] sm:$0xff] %vm16, 0.0
    %32 = vst [vmem:[#allocation2 + $0x80] sm:$0xff] 0.0
    %33 = vst.msk [vmem:[#allocation2 + $0x88] sm:$0xff] %vm16, 0.0
    %34 = vst [vmem:[#allocation2 + $0x90] sm:$0xff] 0.0
    %35 = vst.msk [vmem:[#allocation2 + $0x98] sm:$0xff] %vm16, 0.0
    %36 = vst [vmem:[#allocation2 + $0xa0] sm:$0xff] 0.0
    %37 = vst.msk [vmem:[#allocation2 + $0xa8] sm:$0xff] %vm16, 0.0
    %38 = vst [vmem:[#allocation2 + $0xb0] sm:$0xff] 0.0
    %39 = vst.msk [vmem:[#allocation2 + $0xb8] sm:$0xff] %vm16, 0.0
    %40 = vst [vmem:[#allocation2 + $0xc0] sm:$0xff] 0.0
    %41 = vst.msk [vmem:[#allocation2 + $0xc8] sm:$0xff] %vm16, 0.0
    %42 = vst [vmem:[#allocation2 + $0xd0] sm:$0xff] 0.0
    %43 = vst.msk [vmem:[#allocation2 + $0xd8] sm:$0xff] %vm16, 0.0
    %44 = vst [vmem:[#allocation2 + $0xe0] sm:$0xff] 0.0
    %45 = vst.msk [vmem:[#allocation2 + $0xe8] sm:$0xff] %vm16, 0.0
    %46 = vst [vmem:[#allocation2 + $0xf0] sm:$0xff] 0.0
    %47 = vst.msk [vmem:[#allocation2 + $0xf8] sm:$0xff] %vm16, 0.0
    %48 = vst [vmem:[#allocation2 + $0x100] sm:$0xff] 0.0
    %49 = vst.msk [vmem:[#allocation2 + $0x108] sm:$0xff] %vm16, 0.0
    %50 = vst [vmem:[#allocation2 + $0x110] sm:$0xff] 0.0
    %51 = vst.msk [vmem:[#allocation2 + $0x118] sm:$0xff] %vm16, 0.0
    %52 = vst [vmem:[#allocation2 + $0x120] sm:$0xff] 0.0
    %53 = vst.msk [vmem:[#allocation2 + $0x128] sm:$0xff] %vm16, 0.0
    %54 = vst [vmem:[#allocation2 + $0x130] sm:$0xff] 0.0
    %55 = vst.msk [vmem:[#allocation2 + $0x138] sm:$0xff] %vm16, 0.0
    %56 = vst [vmem:[#allocation2 + $0x140] sm:$0xff] 0.0
    %57 = vst.msk [vmem:[#allocation2 + $0x148] sm:$0xff] %vm16, 0.0
    %58 = vst [vmem:[#allocation2 + $0x150] sm:$0xff] 0.0
    %59 = vst.msk [vmem:[#allocation2 + $0x158] sm:$0xff] %vm16, 0.0
    %60 = vst [vmem:[#allocation2 + $0x160] sm:$0xff] 0.0
    %61 = vst.msk [vmem:[#allocation2 + $0x168] sm:$0xff] %vm16, 0.0
    %62 = vst [vmem:[#allocation2 + $0x170] sm:$0xff] 0.0
    %63 = vst.msk [vmem:[#allocation2 + $0x178] sm:$0xff] %vm16, 0.0
    %64 = vst [vmem:[#allocation2 + $0x180] sm:$0xff] 0.0
    %65 = vst.msk [vmem:[#allocation2 + $0x188] sm:$0xff] %vm16, 0.0
    %66 = vst [vmem:[#allocation2 + $0x190] sm:$0xff] 0.0
    %67 = vst.msk [vmem:[#allocation2 + $0x198] sm:$0xff] %vm16, 0.0
    %68 = vst [vmem:[#allocation2 + $0x1a0] sm:$0xff] 0.0
    %69 = vst.msk [vmem:[#allocation2 + $0x1a8] sm:$0xff] %vm16, 0.0
    %70 = vst [vmem:[#allocation2 + $0x1b0] sm:$0xff] 0.0
    %71 = vst.msk [vmem:[#allocation2 + $0x1b8] sm:$0xff] %vm16, 0.0
    %72 = vst [vmem:[#allocation2 + $0x1c0] sm:$0xff] 0.0
    %73 = vst.msk [vmem:[#allocation2 + $0x1c8] sm:$0xff] %vm16, 0.0
    %74 = vst [vmem:[#allocation2 + $0x1d0] sm:$0xff] 0.0
    %75 = vst.msk [vmem:[#allocation2 + $0x1d8] sm:$0xff] %vm16, 0.0
    %76 = vst [vmem:[#allocation2 + $0x1e0] sm:$0xff] 0.0
    %77 = vst.msk [vmem:[#allocation2 + $0x1e8] sm:$0xff] %vm16, 0.0
    %78 = vst [vmem:[#allocation2 + $0x1f0] sm:$0xff] 0.0
    %79 = vst.msk [vmem:[#allocation2 + $0x1f8] sm:$0xff] %vm16, 0.0
    %80 = vst [vmem:[#allocation2 + $0x200] sm:$0xff] 0.0
    %81 = vst.msk [vmem:[#allocation2 + $0x208] sm:$0xff] %vm16, 0.0
    %82 = vst [vmem:[#allocation2 + $0x210] sm:$0xff] 0.0
    %83 = vst.msk [vmem:[#allocation2 + $0x218] sm:$0xff] %vm16, 0.0
    %84 = vst [vmem:[#allocation2 + $0x220] sm:$0xff] 0.0
    %85 = vst.msk [vmem:[#allocation2 + $0x228] sm:$0xff] %vm16, 0.0
    %86 = vst [vmem:[#allocation2 + $0x230] sm:$0xff] 0.0
    %87 = vst.msk [vmem:[#allocation2 + $0x238] sm:$0xff] %vm16, 0.0
    %88 = vst [vmem:[#allocation2 + $0x240] sm:$0xff] 0.0
    %89 = vst.msk [vmem:[#allocation2 + $0x248] sm:$0xff] %vm16, 0.0
    %90 = vst [vmem:[#allocation2 + $0x250] sm:$0xff] 0.0
    %91 = vst.msk [vmem:[#allocation2 + $0x258] sm:$0xff] %vm16, 0.0
    %92 = vst [vmem:[#allocation2 + $0x260] sm:$0xff] 0.0
    %93 = vst.msk [vmem:[#allocation2 + $0x268] sm:$0xff] %vm16, 0.0
    %94 = vst [vmem:[#allocation2 + $0x270] sm:$0xff] 0.0
    %95 = vst.msk [vmem:[#allocation2 + $0x278] sm:$0xff] %vm16, 0.0
    %96 = vst [vmem:[#allocation2 + $0x280] sm:$0xff] 0.0
    %97 = vst.msk [vmem:[#allocation2 + $0x288] sm:$0xff] %vm16, 0.0
    %98 = vst [vmem:[#allocation2 + $0x290] sm:$0xff] 0.0
    %99 = vst.msk [vmem:[#allocation2 + $0x298] sm:$0xff] %vm16, 0.0
    %100 = vst [vmem:[#allocation2 + $0x2a0] sm:$0xff] 0.0
    %101 = vst.msk [vmem:[#allocation2 + $0x2a8] sm:$0xff] %vm16, 0.0
    %102 = vst [vmem:[#allocation2 + $0x2b0] sm:$0xff] 0.0
    %103 = vst.msk [vmem:[#allocation2 + $0x2b8] sm:$0xff] %vm16, 0.0
    %104 = vst [vmem:[#allocation2 + $0x2c0] sm:$0xff] 0.0
    %105 = vst.msk [vmem:[#allocation2 + $0x2c8] sm:$0xff] %vm16, 0.0
    %106 = vst [vmem:[#allocation2 + $0x2d0] sm:$0xff] 0.0
    %107 = vst.msk [vmem:[#allocation2 + $0x2d8] sm:$0xff] %vm16, 0.0
    %108 = vst [vmem:[#allocation2 + $0x2e0] sm:$0xff] 0.0
    %109 = vst.msk [vmem:[#allocation2 + $0x2e8] sm:$0xff] %vm16, 0.0
    %110 = vst [vmem:[#allocation2 + $0x2f0] sm:$0xff] 0.0
    %111 = vst.msk [vmem:[#allocation2 + $0x2f8] sm:$0xff] %vm16, 0.0
    %112 = vst [vmem:[#allocation2 + $0x300] sm:$0xff] 0.0
    %113 = vst.msk [vmem:[#allocation2 + $0x308] sm:$0xff] %vm16, 0.0
    %114 = vst [vmem:[#allocation2 + $0x310] sm:$0xff] 0.0
    %115 = vst.msk [vmem:[#allocation2 + $0x318] sm:$0xff] %vm16, 0.0
    %116 = vst [vmem:[#allocation2 + $0x320] sm:$0xff] 0.0
    %117 = vst.msk [vmem:[#allocation2 + $0x328] sm:$0xff] %vm16, 0.0
    %118 = vst [vmem:[#allocation2 + $0x330] sm:$0xff] 0.0
    %119 = vst.msk [vmem:[#allocation2 + $0x338] sm:$0xff] %vm16, 0.0
    %120 = vst [vmem:[#allocation2 + $0x340] sm:$0xff] 0.0
    %121 = vst.msk [vmem:[#allocation2 + $0x348] sm:$0xff] %vm16, 0.0
    %122 = vst [vmem:[#allocation2 + $0x350] sm:$0xff] 0.0
    %123 = vst.msk [vmem:[#allocation2 + $0x358] sm:$0xff] %vm16, 0.0
    %124 = vst [vmem:[#allocation2 + $0x360] sm:$0xff] 0.0
    %125 = vst.msk [vmem:[#allocation2 + $0x368] sm:$0xff] %vm16, 0.0
    %126 = vst [vmem:[#allocation2 + $0x370] sm:$0xff] 0.0
    %127 = vst.msk [vmem:[#allocation2 + $0x378] sm:$0xff] %vm16, 0.0
    %128 = vst [vmem:[#allocation2 + $0x380] sm:$0xff] 0.0
    %129 = vst.msk [vmem:[#allocation2 + $0x388] sm:$0xff] %vm16, 0.0
    %130 = vst [vmem:[#allocation2 + $0x390] sm:$0xff] 0.0
    %131 = vst.msk [vmem:[#allocation2 + $0x398] sm:$0xff] %vm16, 0.0
    %132 = vst [vmem:[#allocation2 + $0x3a0] sm:$0xff] 0.0
    %133 = vst.msk [vmem:[#allocation2 + $0x3a8] sm:$0xff] %vm16, 0.0
    %134 = vst [vmem:[#allocation2 + $0x3b0] sm:$0xff] 0.0
    %135 = vst.msk [vmem:[#allocation2 + $0x3b8] sm:$0xff] %vm16, 0.0
    %136 = vst [vmem:[#allocation2 + $0x3c0] sm:$0xff] 0.0
    %137 = vst.msk [vmem:[#allocation2 + $0x3c8] sm:$0xff] %vm16, 0.0
    %138 = vst [vmem:[#allocation2 + $0x3d0] sm:$0xff] 0.0
    %139 = vst.msk [vmem:[#allocation2 + $0x3d8] sm:$0xff] %vm16, 0.0
    %140 = vst [vmem:[#allocation2 + $0x3e0] sm:$0xff] 0.0
    %141 = vst.msk [vmem:[#allocation2 + $0x3e8] sm:$0xff] %vm16, 0.0
    %142 = vst [vmem:[#allocation2 + $0x3f0] sm:$0xff] 0.0
    %143 = vst.msk [vmem:[#allocation2 + $0x3f8] sm:$0xff] %vm16, 0.0
  $region13: #{tpu_custom_call.1} parent=0 // pred_fallthru
    _
  %v144 = vld [vmem:[#allocation2] sm:$0xff]
  %v145 = vld [vmem:[#allocation2 + $0x8] sm:$0xff]
  %v146 = vld [vmem:[#allocation2 + $0x10] sm:$0xff]
  %v147 = vld [vmem:[#allocation2 + $0x18] sm:$0xff]
  %v148 = vld [vmem:[#allocation2 + $0x20] sm:$0xff]
  %v149 = vld [vmem:[#allocation2 + $0x28] sm:$0xff]
  %v150 = vld [vmem:[#allocation2 + $0x30] sm:$0xff]
  %v151 = vld [vmem:[#allocation2 + $0x38] sm:$0xff]
  %v152 = vld [vmem:[#allocation2 + $0x40] sm:$0xff]
  %v153 = vld [vmem:[#allocation2 + $0x48] sm:$0xff]
  %v154 = vld [vmem:[#allocation2 + $0x50] sm:$0xff]
  %v155 = vld [vmem:[#allocation2 + $0x58] sm:$0xff]
  %v156 = vld [vmem:[#allocation2 + $0x60] sm:$0xff]
  %v157 = vld [vmem:[#allocation2 + $0x68] sm:$0xff]
  %v158 = vld [vmem:[#allocation2 + $0x70] sm:$0xff]
  %v159 = vld [vmem:[#allocation2 + $0x78] sm:$0xff]
  %v160 = vld [vmem:[#allocation2 + $0x80] sm:$0xff]
  %v161 = vld [vmem:[#allocation2 + $0x88] sm:$0xff]
  %v162 = vld [vmem:[#allocation2 + $0x90] sm:$0xff]
  %v163 = vld [vmem:[#allocation2 + $0x98] sm:$0xff]
  %v164 = vld [vmem:[#allocation2 + $0xa0] sm:$0xff]
  %v165 = vld [vmem:[#allocation2 + $0xa8] sm:$0xff]
  %v166 = vld [vmem:[#allocation2 + $0xb0] sm:$0xff]
  %v167 = vld [vmem:[#allocation2 + $0xb8] sm:$0xff]
  %v168 = vld [vmem:[#allocation2 + $0xc0] sm:$0xff]
  %v169 = vld [vmem:[#allocation2 + $0xc8] sm:$0xff]
  %v170 = vld [vmem:[#allocation2 + $0xd0] sm:$0xff]
  %v171 = vld [vmem:[#allocation2 + $0xd8] sm:$0xff]
  %v172 = vld [vmem:[#allocation2 + $0xe0] sm:$0xff]
  %v173 = vld [vmem:[#allocation2 + $0xe8] sm:$0xff]
  %v174 = vld [vmem:[#allocation2 + $0xf0] sm:$0xff]
  %v175 = vld [vmem:[#allocation2 + $0xf8] sm:$0xff]
  %v176 = vld [vmem:[#allocation2 + $0x100] sm:$0xff]
  %v177 = vld [vmem:[#allocation2 + $0x108] sm:$0xff]
  %v178 = vld [vmem:[#allocation2 + $0x110] sm:$0xff]
  %v179 = vld [vmem:[#allocation2 + $0x118] sm:$0xff]
  %v180 = vld [vmem:[#allocation2 + $0x120] sm:$0xff]
  %v181 = vld [vmem:[#allocation2 + $0x128] sm:$0xff]
  %v182 = vld [vmem:[#allocation2 + $0x130] sm:$0xff]
  %v183 = vld [vmem:[#allocation2 + $0x138] sm:$0xff]
  %v184 = vld [vmem:[#allocation2 + $0x140] sm:$0xff]
  %v185 = vld [vmem:[#allocation2 + $0x148] sm:$0xff]
  %v186 = vld [vmem:[#allocation2 + $0x150] sm:$0xff]
  %v187 = vld [vmem:[#allocation2 + $0x158] sm:$0xff]
  %v188 = vld [vmem:[#allocation2 + $0x160] sm:$0xff]
  %v189 = vld [vmem:[#allocation2 + $0x168] sm:$0xff]
  %v190 = vld [vmem:[#allocation2 + $0x170] sm:$0xff]
  %v191 = vld [vmem:[#allocation2 + $0x178] sm:$0xff]
  %v192 = vld [vmem:[#allocation2 + $0x180] sm:$0xff]
  %v193 = vld [vmem:[#allocation2 + $0x188] sm:$0xff]
  %v194 = vld [vmem:[#allocation2 + $0x190] sm:$0xff]
  %v195 = vld [vmem:[#allocation2 + $0x198] sm:$0xff]
  %v196 = vld [vmem:[#allocation2 + $0x1a0] sm:$0xff]
  %v197 = vld [vmem:[#allocation2 + $0x1a8] sm:$0xff]
  %v198 = vld [vmem:[#allocation2 + $0x1b0] sm:$0xff]
  %v199 = vld [vmem:[#allocation2 + $0x1b8] sm:$0xff]
  %v200 = vld [vmem:[#allocation2 + $0x1c0] sm:$0xff]
  %v201 = vld [vmem:[#allocation2 + $0x1c8] sm:$0xff]
  %v202 = vld [vmem:[#allocation2 + $0x1d0] sm:$0xff]
  %v203 = vld [vmem:[#allocation2 + $0x1d8] sm:$0xff]
  %v204 = vld [vmem:[#allocation2 + $0x1e0] sm:$0xff]
  %v205 = vld [vmem:[#allocation2 + $0x1e8] sm:$0xff]
  %v206 = vld [vmem:[#allocation2 + $0x1f0] sm:$0xff]
  %v207 = vld [vmem:[#allocation2 + $0x1f8] sm:$0xff]
  %v208 = vld [vmem:[#allocation2 + $0x200] sm:$0xff]
  %v209 = vld [vmem:[#allocation2 + $0x208] sm:$0xff]
  %v210 = vld [vmem:[#allocation2 + $0x210] sm:$0xff]
  %v211 = vld [vmem:[#allocation2 + $0x218] sm:$0xff]
  %v212 = vld [vmem:[#allocation2 + $0x220] sm:$0xff]
  %v213 = vld [vmem:[#allocation2 + $0x228] sm:$0xff]
  %v214 = vld [vmem:[#allocation2 + $0x230] sm:$0xff]
  %v215 = vld [vmem:[#allocation2 + $0x238] sm:$0xff]
  %v216 = vld [vmem:[#allocation2 + $0x240] sm:$0xff]
  %v217 = vld [vmem:[#allocation2 + $0x248] sm:$0xff]
  %v218 = vld [vmem:[#allocation2 + $0x250] sm:$0xff]
  %v219 = vld [vmem:[#allocation2 + $0x258] sm:$0xff]
  %v220 = vld [vmem:[#allocation2 + $0x260] sm:$0xff]
  %v221 = vld [vmem:[#allocation2 + $0x268] sm:$0xff]
  %v222 = vld [vmem:[#allocation2 + $0x270] sm:$0xff]
  %v223 = vld [vmem:[#allocation2 + $0x278] sm:$0xff]
  %v224 = vld [vmem:[#allocation2 + $0x280] sm:$0xff]
  %v225 = vld [vmem:[#allocation2 + $0x288] sm:$0xff]
  %v226 = vld [vmem:[#allocation2 + $0x290] sm:$0xff]
  %v227 = vld [vmem:[#allocation2 + $0x298] sm:$0xff]
  %v228 = vld [vmem:[#allocation2 + $0x2a0] sm:$0xff]
  %v229 = vld [vmem:[#allocation2 + $0x2a8] sm:$0xff]
  %v230 = vld [vmem:[#allocation2 + $0x2b0] sm:$0xff]
  %v231 = vld [vmem:[#allocation2 + $0x2b8] sm:$0xff]
  %v232 = vld [vmem:[#allocation2 + $0x2c0] sm:$0xff]
  %v233 = vld [vmem:[#allocation2 + $0x2c8] sm:$0xff]
  %v234 = vld [vmem:[#allocation2 + $0x2d0] sm:$0xff]
  %v235 = vld [vmem:[#allocation2 + $0x2d8] sm:$0xff]
  %v236 = vld [vmem:[#allocation2 + $0x2e0] sm:$0xff]
  %v237 = vld [vmem:[#allocation2 + $0x2e8] sm:$0xff]
  %v238 = vld [vmem:[#allocation2 + $0x2f0] sm:$0xff]
  %v239 = vld [vmem:[#allocation2 + $0x2f8] sm:$0xff]
  %v240 = vld [vmem:[#allocation2 + $0x300] sm:$0xff]
  %v241 = vld [vmem:[#allocation2 + $0x308] sm:$0xff]
  %v242 = vld [vmem:[#allocation2 + $0x310] sm:$0xff]
  %v243 = vld [vmem:[#allocation2 + $0x318] sm:$0xff]
  %v244 = vld [vmem:[#allocation2 + $0x320] sm:$0xff]
  %v245 = vld [vmem:[#allocation2 + $0x328] sm:$0xff]
  %v246 = vld [vmem:[#allocation2 + $0x330] sm:$0xff]
  %v247 = vld [vmem:[#allocation2 + $0x338] sm:$0xff]
  %v248 = vld [vmem:[#allocation2 + $0x340] sm:$0xff]
  %v249 = vld [vmem:[#allocation2 + $0x348] sm:$0xff]
  %v250 = vld [vmem:[#allocation2 + $0x350] sm:$0xff]
  %v251 = vld [vmem:[#allocation2 + $0x358] sm:$0xff]
  %v252 = vld [vmem:[#allocation2 + $0x360] sm:$0xff]
  %v253 = vld [vmem:[#allocation2 + $0x368] sm:$0xff]
  %v254 = vld [vmem:[#allocation2 + $0x370] sm:$0xff]
  %v255 = vld [vmem:[#allocation2 + $0x378] sm:$0xff]
  %v256 = vld [vmem:[#allocation2 + $0x380] sm:$0xff]
  %v257 = vld [vmem:[#allocation2 + $0x388] sm:$0xff]
  %v258 = vld [vmem:[#allocation2 + $0x390] sm:$0xff]
  %v259 = vld [vmem:[#allocation2 + $0x398] sm:$0xff]
  %v260 = vld [vmem:[#allocation2 + $0x3a0] sm:$0xff]
  %v261 = vld [vmem:[#allocation2 + $0x3a8] sm:$0xff]
  %v262 = vld [vmem:[#allocation2 + $0x3b0] sm:$0xff]
  %v263 = vld [vmem:[#allocation2 + $0x3b8] sm:$0xff]
  %v264 = vld [vmem:[#allocation2 + $0x3c0] sm:$0xff]
  %v265 = vld [vmem:[#allocation2 + $0x3c8] sm:$0xff]
  %v266 = vld [vmem:[#allocation2 + $0x3d0] sm:$0xff]
  %v267 = vld [vmem:[#allocation2 + $0x3d8] sm:$0xff]
  %v268 = vld [vmem:[#allocation2 + $0x3e0] sm:$0xff]
  %v269 = vld [vmem:[#allocation2 + $0x3e8] sm:$0xff]
  %v270 = vld [vmem:[#allocation2 + $0x3f0] sm:$0xff]
  %v271 = vld [vmem:[#allocation2 + $0x3f8] sm:$0xff]
  %v272 = vld [vmem:[%s0] sm:$0xff]
  %v273 = vld [vmem:[%s0 + $0x8] sm:$0xff]
  %v274 = vld [vmem:[%s0 + $0x10] sm:$0xff]
  %v275 = vld [vmem:[%s0 + $0x18] sm:$0xff]
  %v276 = vld [vmem:[%s0 + $0x20] sm:$0xff]
  %v277 = vld [vmem:[%s0 + $0x28] sm:$0xff]
  %v278 = vld [vmem:[%s0 + $0x30] sm:$0xff]
  %v279 = vld [vmem:[%s0 + $0x38] sm:$0xff]
  %v280 = vld [vmem:[%s0 + $0x40] sm:$0xff]
  %v281 = vld [vmem:[%s0 + $0x48] sm:$0xff]
  %v282 = vld [vmem:[%s0 + $0x50] sm:$0xff]
  %v283 = vld [vmem:[%s0 + $0x58] sm:$0xff]
  %v284 = vld [vmem:[%s0 + $0x60] sm:$0xff]
  %v285 = vld [vmem:[%s0 + $0x68] sm:$0xff]
  %v286 = vld [vmem:[%s0 + $0x70] sm:$0xff]
  %v287 = vld [vmem:[%s0 + $0x78] sm:$0xff]
  %v288 = vld [vmem:[%s0 + $0x80] sm:$0xff]
  %v289 = vld [vmem:[%s0 + $0x88] sm:$0xff]
  %v290 = vld [vmem:[%s0 + $0x90] sm:$0xff]
  %v291 = vld [vmem:[%s0 + $0x98] sm:$0xff]
  %v292 = vld [vmem:[%s0 + $0xa0] sm:$0xff]
  %v293 = vld [vmem:[%s0 + $0xa8] sm:$0xff]
  %v294 = vld [vmem:[%s0 + $0xb0] sm:$0xff]
  %v295 = vld [vmem:[%s0 + $0xb8] sm:$0xff]
  %v296 = vld [vmem:[%s0 + $0xc0] sm:$0xff]
  %v297 = vld [vmem:[%s0 + $0xc8] sm:$0xff]
  %v298 = vld [vmem:[%s0 + $0xd0] sm:$0xff]
  %v299 = vld [vmem:[%s0 + $0xd8] sm:$0xff]
  %v300 = vld [vmem:[%s0 + $0xe0] sm:$0xff]
  %v301 = vld [vmem:[%s0 + $0xe8] sm:$0xff]
  %v302 = vld [vmem:[%s0 + $0xf0] sm:$0xff]
  %v303 = vld [vmem:[%s0 + $0xf8] sm:$0xff]
  %v304 = vld [vmem:[%s0 + $0x100] sm:$0xff]
  %v305 = vld [vmem:[%s0 + $0x108] sm:$0xff]
  %v306 = vld [vmem:[%s0 + $0x110] sm:$0xff]
  %v307 = vld [vmem:[%s0 + $0x118] sm:$0xff]
  %v308 = vld [vmem:[%s0 + $0x120] sm:$0xff]
  %v309 = vld [vmem:[%s0 + $0x128] sm:$0xff]
  %v310 = vld [vmem:[%s0 + $0x130] sm:$0xff]
  %v311 = vld [vmem:[%s0 + $0x138] sm:$0xff]
  %v312 = vld [vmem:[%s0 + $0x140] sm:$0xff]
  %v313 = vld [vmem:[%s0 + $0x148] sm:$0xff]
  %v314 = vld [vmem:[%s0 + $0x150] sm:$0xff]
  %v315 = vld [vmem:[%s0 + $0x158] sm:$0xff]
  %v316 = vld [vmem:[%s0 + $0x160] sm:$0xff]
  %v317 = vld [vmem:[%s0 + $0x168] sm:$0xff]
  %v318 = vld [vmem:[%s0 + $0x170] sm:$0xff]
  %v319 = vld [vmem:[%s0 + $0x178] sm:$0xff]
  %v320 = vld [vmem:[%s0 + $0x180] sm:$0xff]
  %v321 = vld [vmem:[%s0 + $0x188] sm:$0xff]
  %v322 = vld [vmem:[%s0 + $0x190] sm:$0xff]
  %v323 = vld [vmem:[%s0 + $0x198] sm:$0xff]
  %v324 = vld [vmem:[%s0 + $0x1a0] sm:$0xff]
  %v325 = vld [vmem:[%s0 + $0x1a8] sm:$0xff]
  %v326 = vld [vmem:[%s0 + $0x1b0] sm:$0xff]
  %v327 = vld [vmem:[%s0 + $0x1b8] sm:$0xff]
  %v328 = vld [vmem:[%s0 + $0x1c0] sm:$0xff]
  %v329 = vld [vmem:[%s0 + $0x1c8] sm:$0xff]
  %v330 = vld [vmem:[%s0 + $0x1d0] sm:$0xff]
  %v331 = vld [vmem:[%s0 + $0x1d8] sm:$0xff]
  %v332 = vld [vmem:[%s0 + $0x1e0] sm:$0xff]
  %v333 = vld [vmem:[%s0 + $0x1e8] sm:$0xff]
  %v334 = vld [vmem:[%s0 + $0x1f0] sm:$0xff]
  %v335 = vld [vmem:[%s0 + $0x1f8] sm:$0xff]
  %v336 = vld [vmem:[%s1] sm:$0xff]
  %v337 = vld [vmem:[%s1 + $0x8] sm:$0xff]
  %v338 = vld [vmem:[%s1 + $0x10] sm:$0xff]
  %v339 = vld [vmem:[%s1 + $0x18] sm:$0xff]
  %v340 = vld [vmem:[%s1 + $0x20] sm:$0xff]
  %v341 = vld [vmem:[%s1 + $0x28] sm:$0xff]
  %v342 = vld [vmem:[%s1 + $0x30] sm:$0xff]
  %v343 = vld [vmem:[%s1 + $0x38] sm:$0xff]
  %v344 = vld [vmem:[%s1 + $0x40] sm:$0xff]
  %v345 = vld [vmem:[%s1 + $0x48] sm:$0xff]
  %v346 = vld [vmem:[%s1 + $0x50] sm:$0xff]
  %v347 = vld [vmem:[%s1 + $0x58] sm:$0xff]
  %v348 = vld [vmem:[%s1 + $0x60] sm:$0xff]
  %v349 = vld [vmem:[%s1 + $0x68] sm:$0xff]
  %v350 = vld [vmem:[%s1 + $0x70] sm:$0xff]
  %v351 = vld [vmem:[%s1 + $0x78] sm:$0xff]
  %vm352 = vcmask 523264
  %v354 = vsel %vm352, %v272, 0
  %v357 = vsel %vm352, %v273, 0
  %v360 = vsel %vm352, %v274, 0
  %v363 = vsel %vm352, %v275, 0
  %v366 = vsel %vm352, %v276, 0
  %v369 = vsel %vm352, %v277, 0
  %v372 = vsel %vm352, %v278, 0
  %v375 = vsel %vm352, %v279, 0
  %v378 = vsel %vm352, %v280, 0
  %v381 = vsel %vm352, %v281, 0
  %v384 = vsel %vm352, %v282, 0
  %v387 = vsel %vm352, %v283, 0
  %v390 = vsel %vm352, %v284, 0
  %v393 = vsel %vm352, %v285, 0
  %v396 = vsel %vm352, %v286, 0
  %v399 = vsel %vm352, %v287, 0
  %v402 = vsel %vm352, %v288, 0
  %v405 = vsel %vm352, %v289, 0
  %v408 = vsel %vm352, %v290, 0
  %v411 = vsel %vm352, %v291, 0
  %v414 = vsel %vm352, %v292, 0
  %v417 = vsel %vm352, %v293, 0
  %v420 = vsel %vm352, %v294, 0
  %v423 = vsel %vm352, %v295, 0
  %v426 = vsel %vm352, %v296, 0
  %v429 = vsel %vm352, %v297, 0
  %v432 = vsel %vm352, %v298, 0
  %v435 = vsel %vm352, %v299, 0
  %v438 = vsel %vm352, %v300, 0
  %v441 = vsel %vm352, %v301, 0
  %v444 = vsel %vm352, %v302, 0
  %v447 = vsel %vm352, %v303, 0
  %v450 = vsel %vm352, %v304, 0
  %v453 = vsel %vm352, %v305, 0
  %v456 = vsel %vm352, %v306, 0
  %v459 = vsel %vm352, %v307, 0
  %v462 = vsel %vm352, %v308, 0
  %v465 = vsel %vm352, %v309, 0
  %v468 = vsel %vm352, %v310, 0
  %v471 = vsel %vm352, %v311, 0
  %v474 = vsel %vm352, %v312, 0
  %v477 = vsel %vm352, %v313, 0
  %v480 = vsel %vm352, %v314, 0
  %v483 = vsel %vm352, %v315, 0
  %v486 = vsel %vm352, %v316, 0
  %v489 = vsel %vm352, %v317, 0
  %v492 = vsel %vm352, %v318, 0
  %v495 = vsel %vm352, %v319, 0
  %v498 = vsel %vm352, %v320, 0
  %v501 = vsel %vm352, %v321, 0
  %v504 = vsel %vm352, %v322, 0
  %v507 = vsel %vm352, %v323, 0
  %v510 = vsel %vm352, %v324, 0
  %v513 = vsel %vm352, %v325, 0
  %v516 = vsel %vm352, %v326, 0
  %v519 = vsel %vm352, %v327, 0
  %v522 = vsel %vm352, %v328, 0
  %v525 = vsel %vm352, %v329, 0
  %v528 = vsel %vm352, %v330, 0
  %v531 = vsel %vm352, %v331, 0
  %v534 = vsel %vm352, %v332, 0
  %v537 = vsel %vm352, %v333, 0
  %v540 = vsel %vm352, %v334, 0
  %v543 = vsel %vm352, %v335, 0
  %545 = vmatpush.msra.mxu0 0.0
  %546 = vmatpush.msra.mxu0 0.0
  %547 = vmatpush.msra.mxu0 0.0
  %548 = vmatpush.msra.mxu0 0.0
  %549 = vmatpush.msra.mxu0 0.0
  %550 = vmatpush.msra.mxu0 0.0
  %551 = vmatpush.msra.mxu0 0.0
  %552 = vmatpush.msra.mxu0 0.0
  %553 = vmatpush.msra.mxu0 %v350
  %554 = vmatpush.msra.mxu0 %v348
  %555 = vmatpush.msra.mxu0 %v346
  %556 = vmatpush.msra.mxu0 %v344
  %557 = vmatpush.msra.mxu0 %v342
  %558 = vmatpush.msra.mxu0 %v340
  %559 = vmatpush.msra.mxu0 %v338
  %560 = vmatpush.msra.mxu0 %v336
  %561 = vmatmul.f32.gmra.mxu0 %v354
  %v562 = vpop.f32.mrf.mxu0
  %v563 = vadd.f32 0.0, %v562
  %564 = vmatmul.f32.gmra.mxu0 %v357
  %v565 = vpop.f32.mrf.mxu0
  %v566 = vadd.f32 0.0, %v565
  %567 = vmatmul.f32.gmra.mxu0 %v360
  %v568 = vpop.f32.mrf.mxu0
  %v569 = vadd.f32 0.0, %v568
  %570 = vmatmul.f32.gmra.mxu0 %v363
  %v571 = vpop.f32.mrf.mxu0
  %v572 = vadd.f32 0.0, %v571
  %573 = vmatmul.f32.gmra.mxu0 %v366
  %v574 = vpop.f32.mrf.mxu0
  %v575 = vadd.f32 0.0, %v574
  %576 = vmatmul.f32.gmra.mxu0 %v369
  %v577 = vpop.f32.mrf.mxu0
  %v578 = vadd.f32 0.0, %v577
  %579 = vmatmul.f32.gmra.mxu0 %v372
  %v580 = vpop.f32.mrf.mxu0
  %v581 = vadd.f32 0.0, %v580
  %582 = vmatmul.f32.gmra.mxu0 %v375
  %v583 = vpop.f32.mrf.mxu0
  %v584 = vadd.f32 0.0, %v583
  %585 = vmatmul.f32.gmra.mxu0 %v378
  %v586 = vpop.f32.mrf.mxu0
  %v587 = vadd.f32 0.0, %v586
  %588 = vmatmul.f32.gmra.mxu0 %v381
  %v589 = vpop.f32.mrf.mxu0
  %v590 = vadd.f32 0.0, %v589
  %591 = vmatmul.f32.gmra.mxu0 %v384
  %v592 = vpop.f32.mrf.mxu0
  %v593 = vadd.f32 0.0, %v592
  %594 = vmatmul.f32.gmra.mxu0 %v387
  %v595 = vpop.f32.mrf.mxu0
  %v596 = vadd.f32 0.0, %v595
  %597 = vmatmul.f32.gmra.mxu0 %v390
  %v598 = vpop.f32.mrf.mxu0
  %v599 = vadd.f32 0.0, %v598
  %600 = vmatmul.f32.gmra.mxu0 %v393
  %v601 = vpop.f32.mrf.mxu0
  %v602 = vadd.f32 0.0, %v601
  %603 = vmatmul.f32.gmra.mxu0 %v396
  %v604 = vpop.f32.mrf.mxu0
  %v605 = vadd.f32 0.0, %v604
  %606 = vmatmul.f32.gmra.mxu0 %v399
  %v607 = vpop.f32.mrf.mxu0
  %v608 = vadd.f32 0.0, %v607
  %609 = vmatmul.f32.gmra.mxu0 %v402
  %v610 = vpop.f32.mrf.mxu0
  %v611 = vadd.f32 0.0, %v610
  %612 = vmatmul.f32.gmra.mxu0 %v405
  %v613 = vpop.f32.mrf.mxu0
  %v614 = vadd.f32 0.0, %v613
  %615 = vmatmul.f32.gmra.mxu0 %v408
  %v616 = vpop.f32.mrf.mxu0
  %v617 = vadd.f32 0.0, %v616
  %618 = vmatmul.f32.gmra.mxu0 %v411
  %v619 = vpop.f32.mrf.mxu0
  %v620 = vadd.f32 0.0, %v619
  %621 = vmatmul.f32.gmra.mxu0 %v414
  %v622 = vpop.f32.mrf.mxu0
  %v623 = vadd.f32 0.0, %v622
  %624 = vmatmul.f32.gmra.mxu0 %v417
  %v625 = vpop.f32.mrf.mxu0
  %v626 = vadd.f32 0.0, %v625
  %627 = vmatmul.f32.gmra.mxu0 %v420
  %v628 = vpop.f32.mrf.mxu0
  %v629 = vadd.f32 0.0, %v628
  %630 = vmatmul.f32.gmra.mxu0 %v423
  %v631 = vpop.f32.mrf.mxu0
  %v632 = vadd.f32 0.0, %v631
  %633 = vmatmul.f32.gmra.mxu0 %v426
  %v634 = vpop.f32.mrf.mxu0
  %v635 = vadd.f32 0.0, %v634
  %636 = vmatmul.f32.gmra.mxu0 %v429
  %v637 = vpop.f32.mrf.mxu0
  %v638 = vadd.f32 0.0, %v637
  %639 = vmatmul.f32.gmra.mxu0 %v432
  %v640 = vpop.f32.mrf.mxu0
  %v641 = vadd.f32 0.0, %v640
  %642 = vmatmul.f32.gmra.mxu0 %v435
  %v643 = vpop.f32.mrf.mxu0
  %v644 = vadd.f32 0.0, %v643
  %645 = vmatmul.f32.gmra.mxu0 %v438
  %v646 = vpop.f32.mrf.mxu0
  %v647 = vadd.f32 0.0, %v646
  %648 = vmatmul.f32.gmra.mxu0 %v441
  %v649 = vpop.f32.mrf.mxu0
  %v650 = vadd.f32 0.0, %v649
  %651 = vmatmul.f32.gmra.mxu0 %v444
  %v652 = vpop.f32.mrf.mxu0
  %v653 = vadd.f32 0.0, %v652
  %654 = vmatmul.f32.gmra.mxu0 %v447
  %v655 = vpop.f32.mrf.mxu0
  %v656 = vadd.f32 0.0, %v655
  %657 = vmatmul.f32.gmra.mxu0 %v450
  %v658 = vpop.f32.mrf.mxu0
  %v659 = vadd.f32 0.0, %v658
  %660 = vmatmul.f32.gmra.mxu0 %v453
  %v661 = vpop.f32.mrf.mxu0
  %v662 = vadd.f32 0.0, %v661
  %663 = vmatmul.f32.gmra.mxu0 %v456
  %v664 = vpop.f32.mrf.mxu0
  %v665 = vadd.f32 0.0, %v664
  %666 = vmatmul.f32.gmra.mxu0 %v459
  %v667 = vpop.f32.mrf.mxu0
  %v668 = vadd.f32 0.0, %v667
  %669 = vmatmul.f32.gmra.mxu0 %v462
  %v670 = vpop.f32.mrf.mxu0
  %v671 = vadd.f32 0.0, %v670
  %672 = vmatmul.f32.gmra.mxu0 %v465
  %v673 = vpop.f32.mrf.mxu0
  %v674 = vadd.f32 0.0, %v673
  %675 = vmatmul.f32.gmra.mxu0 %v468
  %v676 = vpop.f32.mrf.mxu0
  %v677 = vadd.f32 0.0, %v676
  %678 = vmatmul.f32.gmra.mxu0 %v471
  %v679 = vpop.f32.mrf.mxu0
  %v680 = vadd.f32 0.0, %v679
  %681 = vmatmul.f32.gmra.mxu0 %v474
  %v682 = vpop.f32.mrf.mxu0
  %v683 = vadd.f32 0.0, %v682
  %684 = vmatmul.f32.gmra.mxu0 %v477
  %v685 = vpop.f32.mrf.mxu0
  %v686 = vadd.f32 0.0, %v685
  %687 = vmatmul.f32.gmra.mxu0 %v480
  %v688 = vpop.f32.mrf.mxu0
  %v689 = vadd.f32 0.0, %v688
  %690 = vmatmul.f32.gmra.mxu0 %v483
  %v691 = vpop.f32.mrf.mxu0
  %v692 = vadd.f32 0.0, %v691
  %693 = vmatmul.f32.gmra.mxu0 %v486
  %v694 = vpop.f32.mrf.mxu0
  %v695 = vadd.f32 0.0, %v694
  %696 = vmatmul.f32.gmra.mxu0 %v489
  %v697 = vpop.f32.mrf.mxu0
  %v698 = vadd.f32 0.0, %v697
  %699 = vmatmul.f32.gmra.mxu0 %v492
  %v700 = vpop.f32.mrf.mxu0
  %v701 = vadd.f32 0.0, %v700
  %702 = vmatmul.f32.gmra.mxu0 %v495
  %v703 = vpop.f32.mrf.mxu0
  %v704 = vadd.f32 0.0, %v703
  %705 = vmatmul.f32.gmra.mxu0 %v498
  %v706 = vpop.f32.mrf.mxu0
  %v707 = vadd.f32 0.0, %v706
  %708 = vmatmul.f32.gmra.mxu0 %v501
  %v709 = vpop.f32.mrf.mxu0
  %v710 = vadd.f32 0.0, %v709
  %711 = vmatmul.f32.gmra.mxu0 %v504
  %v712 = vpop.f32.mrf.mxu0
  %v713 = vadd.f32 0.0, %v712
  %714 = vmatmul.f32.gmra.mxu0 %v507
  %v715 = vpop.f32.mrf.mxu0
  %v716 = vadd.f32 0.0, %v715
  %717 = vmatmul.f32.gmra.mxu0 %v510
  %v718 = vpop.f32.mrf.mxu0
  %v719 = vadd.f32 0.0, %v718
  %720 = vmatmul.f32.gmra.mxu0 %v513
  %v721 = vpop.f32.mrf.mxu0
  %v722 = vadd.f32 0.0, %v721
  %723 = vmatmul.f32.gmra.mxu0 %v516
  %v724 = vpop.f32.mrf.mxu0
  %v725 = vadd.f32 0.0, %v724
  %726 = vmatmul.f32.gmra.mxu0 %v519
  %v727 = vpop.f32.mrf.mxu0
  %v728 = vadd.f32 0.0, %v727
  %729 = vmatmul.f32.gmra.mxu0 %v522
  %v730 = vpop.f32.mrf.mxu0
  %v731 = vadd.f32 0.0, %v730
  %732 = vmatmul.f32.gmra.mxu0 %v525
  %v733 = vpop.f32.mrf.mxu0
  %v734 = vadd.f32 0.0, %v733
  %735 = vmatmul.f32.gmra.mxu0 %v528
  %v736 = vpop.f32.mrf.mxu0
  %v737 = vadd.f32 0.0, %v736
  %738 = vmatmul.f32.gmra.mxu0 %v531
  %v739 = vpop.f32.mrf.mxu0
  %v740 = vadd.f32 0.0, %v739
  %741 = vmatmul.f32.gmra.mxu0 %v534
  %v742 = vpop.f32.mrf.mxu0
  %v743 = vadd.f32 0.0, %v742
  %744 = vmatmul.f32.gmra.mxu0 %v537
  %v745 = vpop.f32.mrf.mxu0
  %v746 = vadd.f32 0.0, %v745
  %747 = vmatmul.f32.gmra.mxu0 %v540
  %v748 = vpop.f32.mrf.mxu0
  %v749 = vadd.f32 0.0, %v748
  %750 = vmatmul.f32.gmra.mxu0 %v543
  %v751 = vpop.f32.mrf.mxu0
  %v752 = vadd.f32 0.0, %v751
  %753 = vdwg.mxu0
  %754 = vmatpush.msra.mxu0 0.0
  %755 = vmatpush.msra.mxu0 0.0
  %756 = vmatpush.msra.mxu0 0.0
  %757 = vmatpush.msra.mxu0 0.0
  %758 = vmatpush.msra.mxu0 0.0
  %759 = vmatpush.msra.mxu0 0.0
  %760 = vmatpush.msra.mxu0 0.0
  %761 = vmatpush.msra.mxu0 0.0
  %762 = vmatpush.msra.mxu0 %v351
  %763 = vmatpush.msra.mxu0 %v349
  %764 = vmatpush.msra.mxu0 %v347
  %765 = vmatpush.msra.mxu0 %v345
  %766 = vmatpush.msra.mxu0 %v343
  %767 = vmatpush.msra.mxu0 %v341
  %768 = vmatpush.msra.mxu0 %v339
  %769 = vmatpush.msra.mxu0 %v337
  %770 = vmatmul.f32.gmra.mxu0 %v354
  %v771 = vpop.f32.mrf.mxu0
  %v772 = vadd.f32 0.0, %v771
  %773 = vmatmul.f32.gmra.mxu0 %v357
  %v774 = vpop.f32.mrf.mxu0
  %v775 = vadd.f32 0.0, %v774
  %776 = vmatmul.f32.gmra.mxu0 %v360
  %v777 = vpop.f32.mrf.mxu0
  %v778 = vadd.f32 0.0, %v777
  %779 = vmatmul.f32.gmra.mxu0 %v363
  %v780 = vpop.f32.mrf.mxu0
  %v781 = vadd.f32 0.0, %v780
  %782 = vmatmul.f32.gmra.mxu0 %v366
  %v783 = vpop.f32.mrf.mxu0
  %v784 = vadd.f32 0.0, %v783
  %785 = vmatmul.f32.gmra.mxu0 %v369
  %v786 = vpop.f32.mrf.mxu0
  %v787 = vadd.f32 0.0, %v786
  %788 = vmatmul.f32.gmra.mxu0 %v372
  %v789 = vpop.f32.mrf.mxu0
  %v790 = vadd.f32 0.0, %v789
  %791 = vmatmul.f32.gmra.mxu0 %v375
  %v792 = vpop.f32.mrf.mxu0
  %v793 = vadd.f32 0.0, %v792
  %794 = vmatmul.f32.gmra.mxu0 %v378
  %v795 = vpop.f32.mrf.mxu0
  %v796 = vadd.f32 0.0, %v795
  %797 = vmatmul.f32.gmra.mxu0 %v381
  %v798 = vpop.f32.mrf.mxu0
  %v799 = vadd.f32 0.0, %v798
  %800 = vmatmul.f32.gmra.mxu0 %v384
  %v801 = vpop.f32.mrf.mxu0
  %v802 = vadd.f32 0.0, %v801
  %803 = vmatmul.f32.gmra.mxu0 %v387
  %v804 = vpop.f32.mrf.mxu0
  %v805 = vadd.f32 0.0, %v804
  %806 = vmatmul.f32.gmra.mxu0 %v390
  %v807 = vpop.f32.mrf.mxu0
  %v808 = vadd.f32 0.0, %v807
  %809 = vmatmul.f32.gmra.mxu0 %v393
  %v810 = vpop.f32.mrf.mxu0
  %v811 = vadd.f32 0.0, %v810
  %812 = vmatmul.f32.gmra.mxu0 %v396
  %v813 = vpop.f32.mrf.mxu0
  %v814 = vadd.f32 0.0, %v813
  %815 = vmatmul.f32.gmra.mxu0 %v399
  %v816 = vpop.f32.mrf.mxu0
  %v817 = vadd.f32 0.0, %v816
  %818 = vmatmul.f32.gmra.mxu0 %v402
  %v819 = vpop.f32.mrf.mxu0
  %v820 = vadd.f32 0.0, %v819
  %821 = vmatmul.f32.gmra.mxu0 %v405
  %v822 = vpop.f32.mrf.mxu0
  %v823 = vadd.f32 0.0, %v822
  %824 = vmatmul.f32.gmra.mxu0 %v408
  %v825 = vpop.f32.mrf.mxu0
  %v826 = vadd.f32 0.0, %v825
  %827 = vmatmul.f32.gmra.mxu0 %v411
  %v828 = vpop.f32.mrf.mxu0
  %v829 = vadd.f32 0.0, %v828
  %830 = vmatmul.f32.gmra.mxu0 %v414
  %v831 = vpop.f32.mrf.mxu0
  %v832 = vadd.f32 0.0, %v831
  %833 = vmatmul.f32.gmra.mxu0 %v417
  %v834 = vpop.f32.mrf.mxu0
  %v835 = vadd.f32 0.0, %v834
  %836 = vmatmul.f32.gmra.mxu0 %v420
  %v837 = vpop.f32.mrf.mxu0
  %v838 = vadd.f32 0.0, %v837
  %839 = vmatmul.f32.gmra.mxu0 %v423
  %v840 = vpop.f32.mrf.mxu0
  %v841 = vadd.f32 0.0, %v840
  %842 = vmatmul.f32.gmra.mxu0 %v426
  %v843 = vpop.f32.mrf.mxu0
  %v844 = vadd.f32 0.0, %v843
  %845 = vmatmul.f32.gmra.mxu0 %v429
  %v846 = vpop.f32.mrf.mxu0
  %v847 = vadd.f32 0.0, %v846
  %848 = vmatmul.f32.gmra.mxu0 %v432
  %v849 = vpop.f32.mrf.mxu0
  %v850 = vadd.f32 0.0, %v849
  %851 = vmatmul.f32.gmra.mxu0 %v435
  %v852 = vpop.f32.mrf.mxu0
  %v853 = vadd.f32 0.0, %v852
  %854 = vmatmul.f32.gmra.mxu0 %v438
  %v855 = vpop.f32.mrf.mxu0
  %v856 = vadd.f32 0.0, %v855
  %857 = vmatmul.f32.gmra.mxu0 %v441
  %v858 = vpop.f32.mrf.mxu0
  %v859 = vadd.f32 0.0, %v858
  %860 = vmatmul.f32.gmra.mxu0 %v444
  %v861 = vpop.f32.mrf.mxu0
  %v862 = vadd.f32 0.0, %v861
  %863 = vmatmul.f32.gmra.mxu0 %v447
  %v864 = vpop.f32.mrf.mxu0
  %v865 = vadd.f32 0.0, %v864
  %866 = vmatmul.f32.gmra.mxu0 %v450
  %v867 = vpop.f32.mrf.mxu0
  %v868 = vadd.f32 0.0, %v867
  %869 = vmatmul.f32.gmra.mxu0 %v453
  %v870 = vpop.f32.mrf.mxu0
  %v871 = vadd.f32 0.0, %v870
  %872 = vmatmul.f32.gmra.mxu0 %v456
  %v873 = vpop.f32.mrf.mxu0
  %v874 = vadd.f32 0.0, %v873
  %875 = vmatmul.f32.gmra.mxu0 %v459
  %v876 = vpop.f32.mrf.mxu0
  %v877 = vadd.f32 0.0, %v876
  %878 = vmatmul.f32.gmra.mxu0 %v462
  %v879 = vpop.f32.mrf.mxu0
  %v880 = vadd.f32 0.0, %v879
  %881 = vmatmul.f32.gmra.mxu0 %v465
  %v882 = vpop.f32.mrf.mxu0
  %v883 = vadd.f32 0.0, %v882
  %884 = vmatmul.f32.gmra.mxu0 %v468
  %v885 = vpop.f32.mrf.mxu0
  %v886 = vadd.f32 0.0, %v885
  %887 = vmatmul.f32.gmra.mxu0 %v471
  %v888 = vpop.f32.mrf.mxu0
  %v889 = vadd.f32 0.0, %v888
  %890 = vmatmul.f32.gmra.mxu0 %v474
  %v891 = vpop.f32.mrf.mxu0
  %v892 = vadd.f32 0.0, %v891
  %893 = vmatmul.f32.gmra.mxu0 %v477
  %v894 = vpop.f32.mrf.mxu0
  %v895 = vadd.f32 0.0, %v894
  %896 = vmatmul.f32.gmra.mxu0 %v480
  %v897 = vpop.f32.mrf.mxu0
  %v898 = vadd.f32 0.0, %v897
  %899 = vmatmul.f32.gmra.mxu0 %v483
  %v900 = vpop.f32.mrf.mxu0
  %v901 = vadd.f32 0.0, %v900
  %902 = vmatmul.f32.gmra.mxu0 %v486
  %v903 = vpop.f32.mrf.mxu0
  %v904 = vadd.f32 0.0, %v903
  %905 = vmatmul.f32.gmra.mxu0 %v489
  %v906 = vpop.f32.mrf.mxu0
  %v907 = vadd.f32 0.0, %v906
  %908 = vmatmul.f32.gmra.mxu0 %v492
  %v909 = vpop.f32.mrf.mxu0
  %v910 = vadd.f32 0.0, %v909
  %911 = vmatmul.f32.gmra.mxu0 %v495
  %v912 = vpop.f32.mrf.mxu0
  %v913 = vadd.f32 0.0, %v912
  %914 = vmatmul.f32.gmra.mxu0 %v498
  %v915 = vpop.f32.mrf.mxu0
  %v916 = vadd.f32 0.0, %v915
  %917 = vmatmul.f32.gmra.mxu0 %v501
  %v918 = vpop.f32.mrf.mxu0
  %v919 = vadd.f32 0.0, %v918
  %920 = vmatmul.f32.gmra.mxu0 %v504
  %v921 = vpop.f32.mrf.mxu0
  %v922 = vadd.f32 0.0, %v921
  %923 = vmatmul.f32.gmra.mxu0 %v507
  %v924 = vpop.f32.mrf.mxu0
  %v925 = vadd.f32 0.0, %v924
  %926 = vmatmul.f32.gmra.mxu0 %v510
  %v927 = vpop.f32.mrf.mxu0
  %v928 = vadd.f32 0.0, %v927
  %929 = vmatmul.f32.gmra.mxu0 %v513
  %v930 = vpop.f32.mrf.mxu0
  %v931 = vadd.f32 0.0, %v930
  %932 = vmatmul.f32.gmra.mxu0 %v516
  %v933 = vpop.f32.mrf.mxu0
  %v934 = vadd.f32 0.0, %v933
  %935 = vmatmul.f32.gmra.mxu0 %v519
  %v936 = vpop.f32.mrf.mxu0
  %v937 = vadd.f32 0.0, %v936
  %938 = vmatmul.f32.gmra.mxu0 %v522
  %v939 = vpop.f32.mrf.mxu0
  %v940 = vadd.f32 0.0, %v939
  %941 = vmatmul.f32.gmra.mxu0 %v525
  %v942 = vpop.f32.mrf.mxu0
  %v943 = vadd.f32 0.0, %v942
  %944 = vmatmul.f32.gmra.mxu0 %v528
  %v945 = vpop.f32.mrf.mxu0
  %v946 = vadd.f32 0.0, %v945
  %947 = vmatmul.f32.gmra.mxu0 %v531
  %v948 = vpop.f32.mrf.mxu0
  %v949 = vadd.f32 0.0, %v948
  %950 = vmatmul.f32.gmra.mxu0 %v534
  %v951 = vpop.f32.mrf.mxu0
  %v952 = vadd.f32 0.0, %v951
  %953 = vmatmul.f32.gmra.mxu0 %v537
  %v954 = vpop.f32.mrf.mxu0
  %v955 = vadd.f32 0.0, %v954
  %956 = vmatmul.f32.gmra.mxu0 %v540
  %v957 = vpop.f32.mrf.mxu0
  %v958 = vadd.f32 0.0, %v957
  %959 = vmatmul.f32.gmra.mxu0 %v543
  %v960 = vpop.f32.mrf.mxu0
  %v961 = vadd.f32 0.0, %v960
  %962 = vdwg.mxu0
  %v963 = vadd.f32 %v144, %v563
  %v964 = vadd.f32 %v145, %v772
  %v965 = vadd.f32 %v146, %v566
  %v966 = vadd.f32 %v147, %v775
  %v967 = vadd.f32 %v148, %v569
  %v968 = vadd.f32 %v149, %v778
  %v969 = vadd.f32 %v150, %v572
  %v970 = vadd.f32 %v151, %v781
  %v971 = vadd.f32 %v152, %v575
  %v972 = vadd.f32 %v153, %v784
  %v973 = vadd.f32 %v154, %v578
  %v974 = vadd.f32 %v155, %v787
  %v975 = vadd.f32 %v156, %v581
  %v976 = vadd.f32 %v157, %v790
  %v977 = vadd.f32 %v158, %v584
  %v978 = vadd.f32 %v159, %v793
  %v979 = vadd.f32 %v160, %v587
  %v980 = vadd.f32 %v161, %v796
  %v981 = vadd.f32 %v162, %v590
  %v982 = vadd.f32 %v163, %v799
  %v983 = vadd.f32 %v164, %v593
  %v984 = vadd.f32 %v165, %v802
  %v985 = vadd.f32 %v166, %v596
  %v986 = vadd.f32 %v167, %v805
  %v987 = vadd.f32 %v168, %v599
  %v988 = vadd.f32 %v169, %v808
  %v989 = vadd.f32 %v170, %v602
  %v990 = vadd.f32 %v171, %v811
  %v991 = vadd.f32 %v172, %v605
  %v992 = vadd.f32 %v173, %v814
  %v993 = vadd.f32 %v174, %v608
  %v994 = vadd.f32 %v175, %v817
  %v995 = vadd.f32 %v176, %v611
  %v996 = vadd.f32 %v177, %v820
  %v997 = vadd.f32 %v178, %v614
  %v998 = vadd.f32 %v179, %v823
  %v999 = vadd.f32 %v180, %v617
  %v1000 = vadd.f32 %v181, %v826
  %v1001 = vadd.f32 %v182, %v620
  %v1002 = vadd.f32 %v183, %v829
  %v1003 = vadd.f32 %v184, %v623
  %v1004 = vadd.f32 %v185, %v832
  %v1005 = vadd.f32 %v186, %v626
  %v1006 = vadd.f32 %v187, %v835
  %v1007 = vadd.f32 %v188, %v629
  %v1008 = vadd.f32 %v189, %v838
  %v1009 = vadd.f32 %v190, %v632
  %v1010 = vadd.f32 %v191, %v841
  %v1011 = vadd.f32 %v192, %v635
  %v1012 = vadd.f32 %v193, %v844
  %v1013 = vadd.f32 %v194, %v638
  %v1014 = vadd.f32 %v195, %v847
  %v1015 = vadd.f32 %v196, %v641
  %v1016 = vadd.f32 %v197, %v850
  %v1017 = vadd.f32 %v198, %v644
  %v1018 = vadd.f32 %v199, %v853
  %v1019 = vadd.f32 %v200, %v647
  %v1020 = vadd.f32 %v201, %v856
  %v1021 = vadd.f32 %v202, %v650
  %v1022 = vadd.f32 %v203, %v859
  %v1023 = vadd.f32 %v204, %v653
  %v1024 = vadd.f32 %v205, %v862
  %v1025 = vadd.f32 %v206, %v656
  %v1026 = vadd.f32 %v207, %v865
  %v1027 = vadd.f32 %v208, %v659
  %v1028 = vadd.f32 %v209, %v868
  %v1029 = vadd.f32 %v210, %v662
  %v1030 = vadd.f32 %v211, %v871
  %v1031 = vadd.f32 %v212, %v665
  %v1032 = vadd.f32 %v213, %v874
  %v1033 = vadd.f32 %v214, %v668
  %v1034 = vadd.f32 %v215, %v877
  %v1035 = vadd.f32 %v216, %v671
  %v1036 = vadd.f32 %v217, %v880
  %v1037 = vadd.f32 %v218, %v674
  %v1038 = vadd.f32 %v219, %v883
  %v1039 = vadd.f32 %v220, %v677
  %v1040 = vadd.f32 %v221, %v886
  %v1041 = vadd.f32 %v222, %v680
  %v1042 = vadd.f32 %v223, %v889
  %v1043 = vadd.f32 %v224, %v683
  %v1044 = vadd.f32 %v225, %v892
  %v1045 = vadd.f32 %v226, %v686
  %v1046 = vadd.f32 %v227, %v895
  %v1047 = vadd.f32 %v228, %v689
  %v1048 = vadd.f32 %v229, %v898
  %v1049 = vadd.f32 %v230, %v692
  %v1050 = vadd.f32 %v231, %v901
  %v1051 = vadd.f32 %v232, %v695
  %v1052 = vadd.f32 %v233, %v904
  %v1053 = vadd.f32 %v234, %v698
  %v1054 = vadd.f32 %v235, %v907
  %v1055 = vadd.f32 %v236, %v701
  %v1056 = vadd.f32 %v237, %v910
  %v1057 = vadd.f32 %v238, %v704
  %v1058 = vadd.f32 %v239, %v913
  %v1059 = vadd.f32 %v240, %v707
  %v1060 = vadd.f32 %v241, %v916
  %v1061 = vadd.f32 %v242, %v710
  %v1062 = vadd.f32 %v243, %v919
  %v1063 = vadd.f32 %v244, %v713
  %v1064 = vadd.f32 %v245, %v922
  %v1065 = vadd.f32 %v246, %v716
  %v1066 = vadd.f32 %v247, %v925
  %v1067 = vadd.f32 %v248, %v719
  %v1068 = vadd.f32 %v249, %v928
  %v1069 = vadd.f32 %v250, %v722
  %v1070 = vadd.f32 %v251, %v931
  %v1071 = vadd.f32 %v252, %v725
  %v1072 = vadd.f32 %v253, %v934
  %v1073 = vadd.f32 %v254, %v728
  %v1074 = vadd.f32 %v255, %v937
  %v1075 = vadd.f32 %v256, %v731
  %v1076 = vadd.f32 %v257, %v940
  %v1077 = vadd.f32 %v258, %v734
  %v1078 = vadd.f32 %v259, %v943
  %v1079 = vadd.f32 %v260, %v737
  %v1080 = vadd.f32 %v261, %v946
  %v1081 = vadd.f32 %v262, %v740
  %v1082 = vadd.f32 %v263, %v949
  %v1083 = vadd.f32 %v264, %v743
  %v1084 = vadd.f32 %v265, %v952
  %v1085 = vadd.f32 %v266, %v746
  %v1086 = vadd.f32 %v267, %v955
  %v1087 = vadd.f32 %v268, %v749
  %v1088 = vadd.f32 %v269, %v958
  %v1089 = vadd.f32 %v270, %v752
  %v1090 = vadd.f32 %v271, %v961
  %1091 = vst [vmem:[#allocation2] sm:$0xff] %v963
  %1092 = vst.msk [vmem:[#allocation2 + $0x8] sm:$0xff] %vm352, %v964
  %1093 = vst [vmem:[#allocation2 + $0x10] sm:$0xff] %v965
  %1094 = vst.msk [vmem:[#allocation2 + $0x18] sm:$0xff] %vm352, %v966
  %1095 = vst [vmem:[#allocation2 + $0x20] sm:$0xff] %v967
  %1096 = vst.msk [vmem:[#allocation2 + $0x28] sm:$0xff] %vm352, %v968
  %1097 = vst [vmem:[#allocation2 + $0x30] sm:$0xff] %v969
  %1098 = vst.msk [vmem:[#allocation2 + $0x38] sm:$0xff] %vm352, %v970
  %1099 = vst [vmem:[#allocation2 + $0x40] sm:$0xff] %v971
  %1100 = vst.msk [vmem:[#allocation2 + $0x48] sm:$0xff] %vm352, %v972
  %1101 = vst [vmem:[#allocation2 + $0x50] sm:$0xff] %v973
  %1102 = vst.msk [vmem:[#allocation2 + $0x58] sm:$0xff] %vm352, %v974
  %1103 = vst [vmem:[#allocation2 + $0x60] sm:$0xff] %v975
  %1104 = vst.msk [vmem:[#allocation2 + $0x68] sm:$0xff] %vm352, %v976
  %1105 = vst [vmem:[#allocation2 + $0x70] sm:$0xff] %v977
  %1106 = vst.msk [vmem:[#allocation2 + $0x78] sm:$0xff] %vm352, %v978
  %1107 = vst [vmem:[#allocation2 + $0x80] sm:$0xff] %v979
  %1108 = vst.msk [vmem:[#allocation2 + $0x88] sm:$0xff] %vm352, %v980
  %1109 = vst [vmem:[#allocation2 + $0x90] sm:$0xff] %v981
  %1110 = vst.msk [vmem:[#allocation2 + $0x98] sm:$0xff] %vm352, %v982
  %1111 = vst [vmem:[#allocation2 + $0xa0] sm:$0xff] %v983
  %1112 = vst.msk [vmem:[#allocation2 + $0xa8] sm:$0xff] %vm352, %v984
  %1113 = vst [vmem:[#allocation2 + $0xb0] sm:$0xff] %v985
  %1114 = vst.msk [vmem:[#allocation2 + $0xb8] sm:$0xff] %vm352, %v986
  %1115 = vst [vmem:[#allocation2 + $0xc0] sm:$0xff] %v987
  %1116 = vst.msk [vmem:[#allocation2 + $0xc8] sm:$0xff] %vm352, %v988
  %1117 = vst [vmem:[#allocation2 + $0xd0] sm:$0xff] %v989
  %1118 = vst.msk [vmem:[#allocation2 + $0xd8] sm:$0xff] %vm352, %v990
  %1119 = vst [vmem:[#allocation2 + $0xe0] sm:$0xff] %v991
  %1120 = vst.msk [vmem:[#allocation2 + $0xe8] sm:$0xff] %vm352, %v992
  %1121 = vst [vmem:[#allocation2 + $0xf0] sm:$0xff] %v993
  %1122 = vst.msk [vmem:[#allocation2 + $0xf8] sm:$0xff] %vm352, %v994
  %1123 = vst [vmem:[#allocation2 + $0x100] sm:$0xff] %v995
  %1124 = vst.msk [vmem:[#allocation2 + $0x108] sm:$0xff] %vm352, %v996
  %1125 = vst [vmem:[#allocation2 + $0x110] sm:$0xff] %v997
  %1126 = vst.msk [vmem:[#allocation2 + $0x118] sm:$0xff] %vm352, %v998
  %1127 = vst [vmem:[#allocation2 + $0x120] sm:$0xff] %v999
  %1128 = vst.msk [vmem:[#allocation2 + $0x128] sm:$0xff] %vm352, %v1000
  %1129 = vst [vmem:[#allocation2 + $0x130] sm:$0xff] %v1001
  %1130 = vst.msk [vmem:[#allocation2 + $0x138] sm:$0xff] %vm352, %v1002
  %1131 = vst [vmem:[#allocation2 + $0x140] sm:$0xff] %v1003
  %1132 = vst.msk [vmem:[#allocation2 + $0x148] sm:$0xff] %vm352, %v1004
  %1133 = vst [vmem:[#allocation2 + $0x150] sm:$0xff] %v1005
  %1134 = vst.msk [vmem:[#allocation2 + $0x158] sm:$0xff] %vm352, %v1006
  %1135 = vst [vmem:[#allocation2 + $0x160] sm:$0xff] %v1007
  %1136 = vst.msk [vmem:[#allocation2 + $0x168] sm:$0xff] %vm352, %v1008
  %1137 = vst [vmem:[#allocation2 + $0x170] sm:$0xff] %v1009
  %1138 = vst.msk [vmem:[#allocation2 + $0x178] sm:$0xff] %vm352, %v1010
  %1139 = vst [vmem:[#allocation2 + $0x180] sm:$0xff] %v1011
  %1140 = vst.msk [vmem:[#allocation2 + $0x188] sm:$0xff] %vm352, %v1012
  %1141 = vst [vmem:[#allocation2 + $0x190] sm:$0xff] %v1013
  %1142 = vst.msk [vmem:[#allocation2 + $0x198] sm:$0xff] %vm352, %v1014
  %1143 = vst [vmem:[#allocation2 + $0x1a0] sm:$0xff] %v1015
  %1144 = vst.msk [vmem:[#allocation2 + $0x1a8] sm:$0xff] %vm352, %v1016
  %1145 = vst [vmem:[#allocation2 + $0x1b0] sm:$0xff] %v1017
  %1146 = vst.msk [vmem:[#allocation2 + $0x1b8] sm:$0xff] %vm352, %v1018
  %1147 = vst [vmem:[#allocation2 + $0x1c0] sm:$0xff] %v1019
  %1148 = vst.msk [vmem:[#allocation2 + $0x1c8] sm:$0xff] %vm352, %v1020
  %1149 = vst [vmem:[#allocation2 + $0x1d0] sm:$0xff] %v1021
  %1150 = vst.msk [vmem:[#allocation2 + $0x1d8] sm:$0xff] %vm352, %v1022
  %1151 = vst [vmem:[#allocation2 + $0x1e0] sm:$0xff] %v1023
  %1152 = vst.msk [vmem:[#allocation2 + $0x1e8] sm:$0xff] %vm352, %v1024
  %1153 = vst [vmem:[#allocation2 + $0x1f0] sm:$0xff] %v1025
  %1154 = vst.msk [vmem:[#allocation2 + $0x1f8] sm:$0xff] %vm352, %v1026
  %1155 = vst [vmem:[#allocation2 + $0x200] sm:$0xff] %v1027
  %1156 = vst.msk [vmem:[#allocation2 + $0x208] sm:$0xff] %vm352, %v1028
  %1157 = vst [vmem:[#allocation2 + $0x210] sm:$0xff] %v1029
  %1158 = vst.msk [vmem:[#allocation2 + $0x218] sm:$0xff] %vm352, %v1030
  %1159 = vst [vmem:[#allocation2 + $0x220] sm:$0xff] %v1031
  %1160 = vst.msk [vmem:[#allocation2 + $0x228] sm:$0xff] %vm352, %v1032
  %1161 = vst [vmem:[#allocation2 + $0x230] sm:$0xff] %v1033
  %1162 = vst.msk [vmem:[#allocation2 + $0x238] sm:$0xff] %vm352, %v1034
  %1163 = vst [vmem:[#allocation2 + $0x240] sm:$0xff] %v1035
  %1164 = vst.msk [vmem:[#allocation2 + $0x248] sm:$0xff] %vm352, %v1036
  %1165 = vst [vmem:[#allocation2 + $0x250] sm:$0xff] %v1037
  %1166 = vst.msk [vmem:[#allocation2 + $0x258] sm:$0xff] %vm352, %v1038
  %1167 = vst [vmem:[#allocation2 + $0x260] sm:$0xff] %v1039
  %1168 = vst.msk [vmem:[#allocation2 + $0x268] sm:$0xff] %vm352, %v1040
  %1169 = vst [vmem:[#allocation2 + $0x270] sm:$0xff] %v1041
  %1170 = vst.msk [vmem:[#allocation2 + $0x278] sm:$0xff] %vm352, %v1042
  %1171 = vst [vmem:[#allocation2 + $0x280] sm:$0xff] %v1043
  %1172 = vst.msk [vmem:[#allocation2 + $0x288] sm:$0xff] %vm352, %v1044
  %1173 = vst [vmem:[#allocation2 + $0x290] sm:$0xff] %v1045
  %1174 = vst.msk [vmem:[#allocation2 + $0x298] sm:$0xff] %vm352, %v1046
  %1175 = vst [vmem:[#allocation2 + $0x2a0] sm:$0xff] %v1047
  %1176 = vst.msk [vmem:[#allocation2 + $0x2a8] sm:$0xff] %vm352, %v1048
  %1177 = vst [vmem:[#allocation2 + $0x2b0] sm:$0xff] %v1049
  %1178 = vst.msk [vmem:[#allocation2 + $0x2b8] sm:$0xff] %vm352, %v1050
  %1179 = vst [vmem:[#allocation2 + $0x2c0] sm:$0xff] %v1051
  %1180 = vst.msk [vmem:[#allocation2 + $0x2c8] sm:$0xff] %vm352, %v1052
  %1181 = vst [vmem:[#allocation2 + $0x2d0] sm:$0xff] %v1053
  %1182 = vst.msk [vmem:[#allocation2 + $0x2d8] sm:$0xff] %vm352, %v1054
  %1183 = vst [vmem:[#allocation2 + $0x2e0] sm:$0xff] %v1055
  %1184 = vst.msk [vmem:[#allocation2 + $0x2e8] sm:$0xff] %vm352, %v1056
  %1185 = vst [vmem:[#allocation2 + $0x2f0] sm:$0xff] %v1057
  %1186 = vst.msk [vmem:[#allocation2 + $0x2f8] sm:$0xff] %vm352, %v1058
  %1187 = vst [vmem:[#allocation2 + $0x300] sm:$0xff] %v1059
  %1188 = vst.msk [vmem:[#allocation2 + $0x308] sm:$0xff] %vm352, %v1060
  %1189 = vst [vmem:[#allocation2 + $0x310] sm:$0xff] %v1061
  %1190 = vst.msk [vmem:[#allocation2 + $0x318] sm:$0xff] %vm352, %v1062
  %1191 = vst [vmem:[#allocation2 + $0x320] sm:$0xff] %v1063
  %1192 = vst.msk [vmem:[#allocation2 + $0x328] sm:$0xff] %vm352, %v1064
  %1193 = vst [vmem:[#allocation2 + $0x330] sm:$0xff] %v1065
  %1194 = vst.msk [vmem:[#allocation2 + $0x338] sm:$0xff] %vm352, %v1066
  %1195 = vst [vmem:[#allocation2 + $0x340] sm:$0xff] %v1067
  %1196 = vst.msk [vmem:[#allocation2 + $0x348] sm:$0xff] %vm352, %v1068
  %1197 = vst [vmem:[#allocation2 + $0x350] sm:$0xff] %v1069
  %1198 = vst.msk [vmem:[#allocation2 + $0x358] sm:$0xff] %vm352, %v1070
  %1199 = vst [vmem:[#allocation2 + $0x360] sm:$0xff] %v1071
  %1200 = vst.msk [vmem:[#allocation2 + $0x368] sm:$0xff] %vm352, %v1072
  %1201 = vst [vmem:[#allocation2 + $0x370] sm:$0xff] %v1073
  %1202 = vst.msk [vmem:[#allocation2 + $0x378] sm:$0xff] %vm352, %v1074
  %1203 = vst [vmem:[#allocation2 + $0x380] sm:$0xff] %v1075
  %1204 = vst.msk [vmem:[#allocation2 + $0x388] sm:$0xff] %vm352, %v1076
  %1205 = vst [vmem:[#allocation2 + $0x390] sm:$0xff] %v1077
  %1206 = vst.msk [vmem:[#allocation2 + $0x398] sm:$0xff] %vm352, %v1078
  %1207 = vst [vmem:[#allocation2 + $0x3a0] sm:$0xff] %v1079
  %1208 = vst.msk [vmem:[#allocation2 + $0x3a8] sm:$0xff] %vm352, %v1080
  %1209 = vst [vmem:[#allocation2 + $0x3b0] sm:$0xff] %v1081
  %1210 = vst.msk [vmem:[#allocation2 + $0x3b8] sm:$0xff] %vm352, %v1082
  %1211 = vst [vmem:[#allocation2 + $0x3c0] sm:$0xff] %v1083
  %1212 = vst.msk [vmem:[#allocation2 + $0x3c8] sm:$0xff] %vm352, %v1084
  %1213 = vst [vmem:[#allocation2 + $0x3d0] sm:$0xff] %v1085
  %1214 = vst.msk [vmem:[#allocation2 + $0x3d8] sm:$0xff] %vm352, %v1086
  %1215 = vst [vmem:[#allocation2 + $0x3e0] sm:$0xff] %v1087
  %1216 = vst.msk [vmem:[#allocation2 + $0x3e8] sm:$0xff] %vm352, %v1088
  %1217 = vst [vmem:[#allocation2 + $0x3f0] sm:$0xff] %v1089
  %1218 = vst.msk [vmem:[#allocation2 + $0x3f8] sm:$0xff] %vm352, %v1090
  // Predicated region
  $region14: #{tpu_custom_call.1} parent=0 // pred_check
    %p1219 = pneg %p11
  $region15: #{tpu_custom_call.1} parent=0 // pred_check_branch
    %1221 = sbr.rel (%p1219) target = $region17
  $region16: #{tpu_custom_call.1} parent=0 // pred_region
    %v1222 = vld [vmem:[#allocation2] sm:$0xff]
    %v1223 = vld [vmem:[#allocation2 + $0x8] sm:$0xff]
    %v1224 = vld [vmem:[#allocation2 + $0x10] sm:$0xff]
    %v1225 = vld [vmem:[#allocation2 + $0x18] sm:$0xff]
    %v1226 = vld [vmem:[#allocation2 + $0x20] sm:$0xff]
    %v1227 = vld [vmem:[#allocation2 + $0x28] sm:$0xff]
    %v1228 = vld [vmem:[#allocation2 + $0x30] sm:$0xff]
    %v1229 = vld [vmem:[#allocation2 + $0x38] sm:$0xff]
    %v1230 = vld [vmem:[#allocation2 + $0x40] sm:$0xff]
    %v1231 = vld [vmem:[#allocation2 + $0x48] sm:$0xff]
    %v1232 = vld [vmem:[#allocation2 + $0x50] sm:$0xff]
    %v1233 = vld [vmem:[#allocation2 + $0x58] sm:$0xff]
    %v1234 = vld [vmem:[#allocation2 + $0x60] sm:$0xff]
    %v1235 = vld [vmem:[#allocation2 + $0x68] sm:$0xff]
    %v1236 = vld [vmem:[#allocation2 + $0x70] sm:$0xff]
    %v1237 = vld [vmem:[#allocation2 + $0x78] sm:$0xff]
    %v1238 = vld [vmem:[#allocation2 + $0x80] sm:$0xff]
    %v1239 = vld [vmem:[#allocation2 + $0x88] sm:$0xff]
    %v1240 = vld [vmem:[#allocation2 + $0x90] sm:$0xff]
    %v1241 = vld [vmem:[#allocation2 + $0x98] sm:$0xff]
    %v1242 = vld [vmem:[#allocation2 + $0xa0] sm:$0xff]
    %v1243 = vld [vmem:[#allocation2 + $0xa8] sm:$0xff]
    %v1244 = vld [vmem:[#allocation2 + $0xb0] sm:$0xff]
    %v1245 = vld [vmem:[#allocation2 + $0xb8] sm:$0xff]
    %v1246 = vld [vmem:[#allocation2 + $0xc0] sm:$0xff]
    %v1247 = vld [vmem:[#allocation2 + $0xc8] sm:$0xff]
    %v1248 = vld [vmem:[#allocation2 + $0xd0] sm:$0xff]
    %v1249 = vld [vmem:[#allocation2 + $0xd8] sm:$0xff]
    %v1250 = vld [vmem:[#allocation2 + $0xe0] sm:$0xff]
    %v1251 = vld [vmem:[#allocation2 + $0xe8] sm:$0xff]
    %v1252 = vld [vmem:[#allocation2 + $0xf0] sm:$0xff]
    %v1253 = vld [vmem:[#allocation2 + $0xf8] sm:$0xff]
    %v1254 = vld [vmem:[#allocation2 + $0x100] sm:$0xff]
    %v1255 = vld [vmem:[#allocation2 + $0x108] sm:$0xff]
    %v1256 = vld [vmem:[#allocation2 + $0x110] sm:$0xff]
    %v1257 = vld [vmem:[#allocation2 + $0x118] sm:$0xff]
    %v1258 = vld [vmem:[#allocation2 + $0x120] sm:$0xff]
    %v1259 = vld [vmem:[#allocation2 + $0x128] sm:$0xff]
    %v1260 = vld [vmem:[#allocation2 + $0x130] sm:$0xff]
    %v1261 = vld [vmem:[#allocation2 + $0x138] sm:$0xff]
    %v1262 = vld [vmem:[#allocation2 + $0x140] sm:$0xff]
    %v1263 = vld [vmem:[#allocation2 + $0x148] sm:$0xff]
    %v1264 = vld [vmem:[#allocation2 + $0x150] sm:$0xff]
    %v1265 = vld [vmem:[#allocation2 + $0x158] sm:$0xff]
    %v1266 = vld [vmem:[#allocation2 + $0x160] sm:$0xff]
    %v1267 = vld [vmem:[#allocation2 + $0x168] sm:$0xff]
    %v1268 = vld [vmem:[#allocation2 + $0x170] sm:$0xff]
    %v1269 = vld [vmem:[#allocation2 + $0x178] sm:$0xff]
    %v1270 = vld [vmem:[#allocation2 + $0x180] sm:$0xff]
    %v1271 = vld [vmem:[#allocation2 + $0x188] sm:$0xff]
    %v1272 = vld [vmem:[#allocation2 + $0x190] sm:$0xff]
    %v1273 = vld [vmem:[#allocation2 + $0x198] sm:$0xff]
    %v1274 = vld [vmem:[#allocation2 + $0x1a0] sm:$0xff]
    %v1275 = vld [vmem:[#allocation2 + $0x1a8] sm:$0xff]
    %v1276 = vld [vmem:[#allocation2 + $0x1b0] sm:$0xff]
    %v1277 = vld [vmem:[#allocation2 + $0x1b8] sm:$0xff]
    %v1278 = vld [vmem:[#allocation2 + $0x1c0] sm:$0xff]
    %v1279 = vld [vmem:[#allocation2 + $0x1c8] sm:$0xff]
    %v1280 = vld [vmem:[#allocation2 + $0x1d0] sm:$0xff]
    %v1281 = vld [vmem:[#allocation2 + $0x1d8] sm:$0xff]
    %v1282 = vld [vmem:[#allocation2 + $0x1e0] sm:$0xff]
    %v1283 = vld [vmem:[#allocation2 + $0x1e8] sm:$0xff]
    %v1284 = vld [vmem:[#allocation2 + $0x1f0] sm:$0xff]
    %v1285 = vld [vmem:[#allocation2 + $0x1f8] sm:$0xff]
    %v1286 = vld [vmem:[#allocation2 + $0x200] sm:$0xff]
    %v1287 = vld [vmem:[#allocation2 + $0x208] sm:$0xff]
    %v1288 = vld [vmem:[#allocation2 + $0x210] sm:$0xff]
    %v1289 = vld [vmem:[#allocation2 + $0x218] sm:$0xff]
    %v1290 = vld [vmem:[#allocation2 + $0x220] sm:$0xff]
    %v1291 = vld [vmem:[#allocation2 + $0x228] sm:$0xff]
    %v1292 = vld [vmem:[#allocation2 + $0x230] sm:$0xff]
    %v1293 = vld [vmem:[#allocation2 + $0x238] sm:$0xff]
    %v1294 = vld [vmem:[#allocation2 + $0x240] sm:$0xff]
    %v1295 = vld [vmem:[#allocation2 + $0x248] sm:$0xff]
    %v1296 = vld [vmem:[#allocation2 + $0x250] sm:$0xff]
    %v1297 = vld [vmem:[#allocation2 + $0x258] sm:$0xff]
    %v1298 = vld [vmem:[#allocation2 + $0x260] sm:$0xff]
    %v1299 = vld [vmem:[#allocation2 + $0x268] sm:$0xff]
    %v1300 = vld [vmem:[#allocation2 + $0x270] sm:$0xff]
    %v1301 = vld [vmem:[#allocation2 + $0x278] sm:$0xff]
    %v1302 = vld [vmem:[#allocation2 + $0x280] sm:$0xff]
    %v1303 = vld [vmem:[#allocation2 + $0x288] sm:$0xff]
    %v1304 = vld [vmem:[#allocation2 + $0x290] sm:$0xff]
    %v1305 = vld [vmem:[#allocation2 + $0x298] sm:$0xff]
    %v1306 = vld [vmem:[#allocation2 + $0x2a0] sm:$0xff]
    %v1307 = vld [vmem:[#allocation2 + $0x2a8] sm:$0xff]
    %v1308 = vld [vmem:[#allocation2 + $0x2b0] sm:$0xff]
    %v1309 = vld [vmem:[#allocation2 + $0x2b8] sm:$0xff]
    %v1310 = vld [vmem:[#allocation2 + $0x2c0] sm:$0xff]
    %v1311 = vld [vmem:[#allocation2 + $0x2c8] sm:$0xff]
    %v1312 = vld [vmem:[#allocation2 + $0x2d0] sm:$0xff]
    %v1313 = vld [vmem:[#allocation2 + $0x2d8] sm:$0xff]
    %v1314 = vld [vmem:[#allocation2 + $0x2e0] sm:$0xff]
    %v1315 = vld [vmem:[#allocation2 + $0x2e8] sm:$0xff]
    %v1316 = vld [vmem:[#allocation2 + $0x2f0] sm:$0xff]
    %v1317 = vld [vmem:[#allocation2 + $0x2f8] sm:$0xff]
    %v1318 = vld [vmem:[#allocation2 + $0x300] sm:$0xff]
    %v1319 = vld [vmem:[#allocation2 + $0x308] sm:$0xff]
    %v1320 = vld [vmem:[#allocation2 + $0x310] sm:$0xff]
    %v1321 = vld [vmem:[#allocation2 + $0x318] sm:$0xff]
    %v1322 = vld [vmem:[#allocation2 + $0x320] sm:$0xff]
    %v1323 = vld [vmem:[#allocation2 + $0x328] sm:$0xff]
    %v1324 = vld [vmem:[#allocation2 + $0x330] sm:$0xff]
    %v1325 = vld [vmem:[#allocation2 + $0x338] sm:$0xff]
    %v1326 = vld [vmem:[#allocation2 + $0x340] sm:$0xff]
    %v1327 = vld [vmem:[#allocation2 + $0x348] sm:$0xff]
    %v1328 = vld [vmem:[#allocation2 + $0x350] sm:$0xff]
    %v1329 = vld [vmem:[#allocation2 + $0x358] sm:$0xff]
    %v1330 = vld [vmem:[#allocation2 + $0x360] sm:$0xff]
    %v1331 = vld [vmem:[#allocation2 + $0x368] sm:$0xff]
    %v1332 = vld [vmem:[#allocation2 + $0x370] sm:$0xff]
    %v1333 = vld [vmem:[#allocation2 + $0x378] sm:$0xff]
    %v1334 = vld [vmem:[#allocation2 + $0x380] sm:$0xff]
    %v1335 = vld [vmem:[#allocation2 + $0x388] sm:$0xff]
    %v1336 = vld [vmem:[#allocation2 + $0x390] sm:$0xff]
    %v1337 = vld [vmem:[#allocation2 + $0x398] sm:$0xff]
    %v1338 = vld [vmem:[#allocation2 + $0x3a0] sm:$0xff]
    %v1339 = vld [vmem:[#allocation2 + $0x3a8] sm:$0xff]
    %v1340 = vld [vmem:[#allocation2 + $0x3b0] sm:$0xff]
    %v1341 = vld [vmem:[#allocation2 + $0x3b8] sm:$0xff]
    %v1342 = vld [vmem:[#allocation2 + $0x3c0] sm:$0xff]
    %v1343 = vld [vmem:[#allocation2 + $0x3c8] sm:$0xff]
    %v1344 = vld [vmem:[#allocation2 + $0x3d0] sm:$0xff]
    %v1345 = vld [vmem:[#allocation2 + $0x3d8] sm:$0xff]
    %v1346 = vld [vmem:[#allocation2 + $0x3e0] sm:$0xff]
    %v1347 = vld [vmem:[#allocation2 + $0x3e8] sm:$0xff]
    %v1348 = vld [vmem:[#allocation2 + $0x3f0] sm:$0xff]
    %v1349 = vld [vmem:[#allocation2 + $0x3f8] sm:$0xff]
    %1350 = vst [vmem:[%s2] sm:$0xff] %v1222
    %1351 = vst.msk [vmem:[%s2 + $0x8] sm:$0xff] %vm352, %v1223
    %1352 = vst [vmem:[%s2 + $0x10] sm:$0xff] %v1224
    %1353 = vst.msk [vmem:[%s2 + $0x18] sm:$0xff] %vm352, %v1225
    %1354 = vst [vmem:[%s2 + $0x20] sm:$0xff] %v1226
    %1355 = vst.msk [vmem:[%s2 + $0x28] sm:$0xff] %vm352, %v1227
    %1356 = vst [vmem:[%s2 + $0x30] sm:$0xff] %v1228
    %1357 = vst.msk [vmem:[%s2 + $0x38] sm:$0xff] %vm352, %v1229
    %1358 = vst [vmem:[%s2 + $0x40] sm:$0xff] %v1230
    %1359 = vst.msk [vmem:[%s2 + $0x48] sm:$0xff] %vm352, %v1231
    %1360 = vst [vmem:[%s2 + $0x50] sm:$0xff] %v1232
    %1361 = vst.msk [vmem:[%s2 + $0x58] sm:$0xff] %vm352, %v1233
    %1362 = vst [vmem:[%s2 + $0x60] sm:$0xff] %v1234
    %1363 = vst.msk [vmem:[%s2 + $0x68] sm:$0xff] %vm352, %v1235
    %1364 = vst [vmem:[%s2 + $0x70] sm:$0xff] %v1236
    %1365 = vst.msk [vmem:[%s2 + $0x78] sm:$0xff] %vm352, %v1237
    %1366 = vst [vmem:[%s2 + $0x80] sm:$0xff] %v1238
    %1367 = vst.msk [vmem:[%s2 + $0x88] sm:$0xff] %vm352, %v1239
    %1368 = vst [vmem:[%s2 + $0x90] sm:$0xff] %v1240
    %1369 = vst.msk [vmem:[%s2 + $0x98] sm:$0xff] %vm352, %v1241
    %1370 = vst [vmem:[%s2 + $0xa0] sm:$0xff] %v1242
    %1371 = vst.msk [vmem:[%s2 + $0xa8] sm:$0xff] %vm352, %v1243
    %1372 = vst [vmem:[%s2 + $0xb0] sm:$0xff] %v1244
    %1373 = vst.msk [vmem:[%s2 + $0xb8] sm:$0xff] %vm352, %v1245
    %1374 = vst [vmem:[%s2 + $0xc0] sm:$0xff] %v1246
    %1375 = vst.msk [vmem:[%s2 + $0xc8] sm:$0xff] %vm352, %v1247
    %1376 = vst [vmem:[%s2 + $0xd0] sm:$0xff] %v1248
    %1377 = vst.msk [vmem:[%s2 + $0xd8] sm:$0xff] %vm352, %v1249
    %1378 = vst [vmem:[%s2 + $0xe0] sm:$0xff] %v1250
    %1379 = vst.msk [vmem:[%s2 + $0xe8] sm:$0xff] %vm352, %v1251
    %1380 = vst [vmem:[%s2 + $0xf0] sm:$0xff] %v1252
    %1381 = vst.msk [vmem:[%s2 + $0xf8] sm:$0xff] %vm352, %v1253
    %1382 = vst [vmem:[%s2 + $0x100] sm:$0xff] %v1254
    %1383 = vst.msk [vmem:[%s2 + $0x108] sm:$0xff] %vm352, %v1255
    %1384 = vst [vmem:[%s2 + $0x110] sm:$0xff] %v1256
    %1385 = vst.msk [vmem:[%s2 + $0x118] sm:$0xff] %vm352, %v1257
    %1386 = vst [vmem:[%s2 + $0x120] sm:$0xff] %v1258
    %1387 = vst.msk [vmem:[%s2 + $0x128] sm:$0xff] %vm352, %v1259
    %1388 = vst [vmem:[%s2 + $0x130] sm:$0xff] %v1260
    %1389 = vst.msk [vmem:[%s2 + $0x138] sm:$0xff] %vm352, %v1261
    %1390 = vst [vmem:[%s2 + $0x140] sm:$0xff] %v1262
    %1391 = vst.msk [vmem:[%s2 + $0x148] sm:$0xff] %vm352, %v1263
    %1392 = vst [vmem:[%s2 + $0x150] sm:$0xff] %v1264
    %1393 = vst.msk [vmem:[%s2 + $0x158] sm:$0xff] %vm352, %v1265
    %1394 = vst [vmem:[%s2 + $0x160] sm:$0xff] %v1266
    %1395 = vst.msk [vmem:[%s2 + $0x168] sm:$0xff] %vm352, %v1267
    %1396 = vst [vmem:[%s2 + $0x170] sm:$0xff] %v1268
    %1397 = vst.msk [vmem:[%s2 + $0x178] sm:$0xff] %vm352, %v1269
    %1398 = vst [vmem:[%s2 + $0x180] sm:$0xff] %v1270
    %1399 = vst.msk [vmem:[%s2 + $0x188] sm:$0xff] %vm352, %v1271
    %1400 = vst [vmem:[%s2 + $0x190] sm:$0xff] %v1272
    %1401 = vst.msk [vmem:[%s2 + $0x198] sm:$0xff] %vm352, %v1273
    %1402 = vst [vmem:[%s2 + $0x1a0] sm:$0xff] %v1274
    %1403 = vst.msk [vmem:[%s2 + $0x1a8] sm:$0xff] %vm352, %v1275
    %1404 = vst [vmem:[%s2 + $0x1b0] sm:$0xff] %v1276
    %1405 = vst.msk [vmem:[%s2 + $0x1b8] sm:$0xff] %vm352, %v1277
    %1406 = vst [vmem:[%s2 + $0x1c0] sm:$0xff] %v1278
    %1407 = vst.msk [vmem:[%s2 + $0x1c8] sm:$0xff] %vm352, %v1279
    %1408 = vst [vmem:[%s2 + $0x1d0] sm:$0xff] %v1280
    %1409 = vst.msk [vmem:[%s2 + $0x1d8] sm:$0xff] %vm352, %v1281
    %1410 = vst [vmem:[%s2 + $0x1e0] sm:$0xff] %v1282
    %1411 = vst.msk [vmem:[%s2 + $0x1e8] sm:$0xff] %vm352, %v1283
    %1412 = vst [vmem:[%s2 + $0x1f0] sm:$0xff] %v1284
    %1413 = vst.msk [vmem:[%s2 + $0x1f8] sm:$0xff] %vm352, %v1285
    %1414 = vst [vmem:[%s2 + $0x200] sm:$0xff] %v1286
    %1415 = vst.msk [vmem:[%s2 + $0x208] sm:$0xff] %vm352, %v1287
    %1416 = vst [vmem:[%s2 + $0x210] sm:$0xff] %v1288
    %1417 = vst.msk [vmem:[%s2 + $0x218] sm:$0xff] %vm352, %v1289
    %1418 = vst [vmem:[%s2 + $0x220] sm:$0xff] %v1290
    %1419 = vst.msk [vmem:[%s2 + $0x228] sm:$0xff] %vm352, %v1291
    %1420 = vst [vmem:[%s2 + $0x230] sm:$0xff] %v1292
    %1421 = vst.msk [vmem:[%s2 + $0x238] sm:$0xff] %vm352, %v1293
    %1422 = vst [vmem:[%s2 + $0x240] sm:$0xff] %v1294
    %1423 = vst.msk [vmem:[%s2 + $0x248] sm:$0xff] %vm352, %v1295
    %1424 = vst [vmem:[%s2 + $0x250] sm:$0xff] %v1296
    %1425 = vst.msk [vmem:[%s2 + $0x258] sm:$0xff] %vm352, %v1297
    %1426 = vst [vmem:[%s2 + $0x260] sm:$0xff] %v1298
    %1427 = vst.msk [vmem:[%s2 + $0x268] sm:$0xff] %vm352, %v1299
    %1428 = vst [vmem:[%s2 + $0x270] sm:$0xff] %v1300
    %1429 = vst.msk [vmem:[%s2 + $0x278] sm:$0xff] %vm352, %v1301
    %1430 = vst [vmem:[%s2 + $0x280] sm:$0xff] %v1302
    %1431 = vst.msk [vmem:[%s2 + $0x288] sm:$0xff] %vm352, %v1303
    %1432 = vst [vmem:[%s2 + $0x290] sm:$0xff] %v1304
    %1433 = vst.msk [vmem:[%s2 + $0x298] sm:$0xff] %vm352, %v1305
    %1434 = vst [vmem:[%s2 + $0x2a0] sm:$0xff] %v1306
    %1435 = vst.msk [vmem:[%s2 + $0x2a8] sm:$0xff] %vm352, %v1307
    %1436 = vst [vmem:[%s2 + $0x2b0] sm:$0xff] %v1308
    %1437 = vst.msk [vmem:[%s2 + $0x2b8] sm:$0xff] %vm352, %v1309
    %1438 = vst [vmem:[%s2 + $0x2c0] sm:$0xff] %v1310
    %1439 = vst.msk [vmem:[%s2 + $0x2c8] sm:$0xff] %vm352, %v1311
    %1440 = vst [vmem:[%s2 + $0x2d0] sm:$0xff] %v1312
    %1441 = vst.msk [vmem:[%s2 + $0x2d8] sm:$0xff] %vm352, %v1313
    %1442 = vst [vmem:[%s2 + $0x2e0] sm:$0xff] %v1314
    %1443 = vst.msk [vmem:[%s2 + $0x2e8] sm:$0xff] %vm352, %v1315
    %1444 = vst [vmem:[%s2 + $0x2f0] sm:$0xff] %v1316
    %1445 = vst.msk [vmem:[%s2 + $0x2f8] sm:$0xff] %vm352, %v1317
    %1446 = vst [vmem:[%s2 + $0x300] sm:$0xff] %v1318
    %1447 = vst.msk [vmem:[%s2 + $0x308] sm:$0xff] %vm352, %v1319
    %1448 = vst [vmem:[%s2 + $0x310] sm:$0xff] %v1320
    %1449 = vst.msk [vmem:[%s2 + $0x318] sm:$0xff] %vm352, %v1321
    %1450 = vst [vmem:[%s2 + $0x320] sm:$0xff] %v1322
    %1451 = vst.msk [vmem:[%s2 + $0x328] sm:$0xff] %vm352, %v1323
    %1452 = vst [vmem:[%s2 + $0x330] sm:$0xff] %v1324
    %1453 = vst.msk [vmem:[%s2 + $0x338] sm:$0xff] %vm352, %v1325
    %1454 = vst [vmem:[%s2 + $0x340] sm:$0xff] %v1326
    %1455 = vst.msk [vmem:[%s2 + $0x348] sm:$0xff] %vm352, %v1327
    %1456 = vst [vmem:[%s2 + $0x350] sm:$0xff] %v1328
    %1457 = vst.msk [vmem:[%s2 + $0x358] sm:$0xff] %vm352, %v1329
    %1458 = vst [vmem:[%s2 + $0x360] sm:$0xff] %v1330
    %1459 = vst.msk [vmem:[%s2 + $0x368] sm:$0xff] %vm352, %v1331
    %1460 = vst [vmem:[%s2 + $0x370] sm:$0xff] %v1332
    %1461 = vst.msk [vmem:[%s2 + $0x378] sm:$0xff] %vm352, %v1333
    %1462 = vst [vmem:[%s2 + $0x380] sm:$0xff] %v1334
    %1463 = vst.msk [vmem:[%s2 + $0x388] sm:$0xff] %vm352, %v1335
    %1464 = vst [vmem:[%s2 + $0x390] sm:$0xff] %v1336
    %1465 = vst.msk [vmem:[%s2 + $0x398] sm:$0xff] %vm352, %v1337
    %1466 = vst [vmem:[%s2 + $0x3a0] sm:$0xff] %v1338
    %1467 = vst.msk [vmem:[%s2 + $0x3a8] sm:$0xff] %vm352, %v1339
    %1468 = vst [vmem:[%s2 + $0x3b0] sm:$0xff] %v1340
    %1469 = vst.msk [vmem:[%s2 + $0x3b8] sm:$0xff] %vm352, %v1341
    %1470 = vst [vmem:[%s2 + $0x3c0] sm:$0xff] %v1342
    %1471 = vst.msk [vmem:[%s2 + $0x3c8] sm:$0xff] %vm352, %v1343
    %1472 = vst [vmem:[%s2 + $0x3d0] sm:$0xff] %v1344
    %1473 = vst.msk [vmem:[%s2 + $0x3d8] sm:$0xff] %vm352, %v1345
    %1474 = vst [vmem:[%s2 + $0x3e0] sm:$0xff] %v1346
    %1475 = vst.msk [vmem:[%s2 + $0x3e8] sm:$0xff] %vm352, %v1347
    %1476 = vst [vmem:[%s2 + $0x3f0] sm:$0xff] %v1348
    %1477 = vst.msk [vmem:[%s2 + $0x3f8] sm:$0xff] %vm352, %v1349
  $region17: #{tpu_custom_call.1} parent=0 // pred_fallthru
    _
  // Predicated region
  $region18: #{tpu_custom_call.1} parent=0 // pred_check
    _
  $region19: #{tpu_custom_call.1} parent=0 // pred_check_branch
    %1479 = sbr.rel (0) target = $region21
  $region20: #{tpu_custom_call.1} parent=0 // pred_region
    _
  $region21: #{tpu_custom_call.1} parent=0 // pred_fallthru
    _
  // Predicated region
  $region22: #{tpu_custom_call.1} parent=0 // pred_check
    _
  $region23: #{tpu_custom_call.1} parent=0 // pred_check_branch
    %1481 = sbr.rel (0) target = $region25
  $region24: #{tpu_custom_call.1} parent=0 // pred_region
    _
  $region25: #{tpu_custom_call.1} parent=0 // pred_fallthru
    _

</llo_original>
